<compile_context>
chip_gen: v5e
topology: v5e:2x2
jax: 0.10.0
libtpu: 0.0.40
codegen_flags: <defaults>
</compile_context>

<pallas_src>
import functools

import jax
import jax.numpy as jnp
import numpy as np
from jax.experimental import pallas as pl
from jax.experimental.pallas import tpu as pltpu

# Branch configuration matching the PyTorch module:
#   Conv2d(1, 128, (k, ndim), padding=(p, 0)) for (k, p) below.
CONV_SPECS = ((1, 0), (2, 1), (3, 1), (4, 2), (5, 2))
N_FILTERS = 128
FEAT = N_FILTERS * len(CONV_SPECS)     # 640  (linear1 input)
HID = N_FILTERS * 2                    # 256  (linear1 output)
LANE = 128
MATMUL_DTYPE = jnp.bfloat16            # MXU operand dtype; accumulation stays f32

VMEM_LIMIT_BYTES = 32 * 1024 * 1024    # explicit scoped-VMEM limit (safe on v5e/v6e/v7x)
VMEM_BUDGET_BYTES = 24 * 1024 * 1024   # planning budget for tile selection (< limit)


def _round_up(n, m):
    return -(-n // m) * m


def _cdiv(a, b):
    return -(-a // b)


def _block_spec(shape, index_map, *, buffers=None):
    """BlockSpec with optional explicit buffer count.  Falls back to the plain
    BlockSpec if this JAX build has no pipeline_mode kwarg (correctness first)."""
    if buffers is None:
        return pl.BlockSpec(shape, index_map)
    try:
        return pl.BlockSpec(shape, index_map, pipeline_mode=pl.Buffered(buffers))
    except TypeError:
        return pl.BlockSpec(shape, index_map)


def _projector_kernel(x_ref, weff_ref, bconv_ref, w1_ref, b1_ref, w2_ref, b2_ref,
                      out_ref, acc_ref):
    # Grid = (batch tiles [parallel], K tiles over word*ndim [arbitrary]).
    # x_ref: (TB, TK) f32 (cast to bf16 here, not in the wrapper).
    # Weights are bf16, pre-transposed to (in, out); biases f32.
    k = pl.program_id(1)

    @pl.when(k == 0)
    def _():
        acc_ref[...] = jnp.zeros_like(acc_ref)

    # conv + adaptive-avg-pool of all 5 branches == one MXU matmul against the
    # host-folded effective weight (K-tiled, accumulated in f32 VMEM scratch).
    acc_ref[...] += jnp.dot(x_ref[...].astype(MATMUL_DTYPE), weff_ref[...],
                            preferred_element_type=jnp.float32)

    @pl.when(k == pl.num_programs(1) - 1)
    def _():
        feat = jnp.maximum(acc_ref[...] + bconv_ref[...], 0.0)           # conv bias + relu
        h1 = jnp.dot(feat.astype(MATMUL_DTYPE), w1_ref[...],
                     preferred_element_type=jnp.float32)
        h1 = jnp.maximum(h1 + b1_ref[...], 0.0)                          # linear1 + relu
        h2 = jnp.dot(h1.astype(MATMUL_DTYPE), w2_ref[...],
                     preferred_element_type=jnp.float32)
        out_ref[...] = jnp.tanh(h2 + b2_ref[...]).astype(out_ref.dtype)  # linear2 + tanh


def prepare_params(params, seq_len, ndim, *, max_k_tile=2048):
    """One-time host-side glue (hoisted out of the hot path).

    Folds each conv branch + adaptive average pool into a slab of an effective
    (K_pad, 640) weight, pre-transposes/pre-casts the linear layers, lane-pads
    the final projection to 128 output lanes, and fixes the K tiling (multiple
    of 128, capped so each w_eff tile double-buffers comfortably on v7x).
    """
    L, D = seq_len, ndim
    LD = L * D

    # K tiling of the flattened (word, ndim) axis.
    ld128 = _round_up(LD, LANE)
    max_k = _round_up(max(max_k_tile, LANE), LANE)
    if ld128 <= max_k:
        tk, num_k = ld128, 1
    else:
        num_k = _cdiv(ld128, max_k)
        tk = _round_up(_cdiv(ld128, num_k), LANE)
    ld_pad = tk * num_k

    w_eff_branches = []
    for (k, p), w in zip(CONV_SPECS, params["conv_w"]):
        h_out = L + 2 * p - k + 1                    # conv output height (width is 1)
        assert h_out >= 1
        wt = jnp.transpose(w[:, 0, :, :], (1, 2, 0)).astype(jnp.float32)      # (k, D, 128)
        j = jnp.arange(L)[:, None]
        dh = jnp.arange(k)[None, :]
        # x row j contributes through tap dh iff conv output row h = j + p - dh
        # lies in [0, h_out); this also encodes the zero padding of the word axis.
        valid = ((j + p - dh >= 0) & (j + p - dh < h_out)).astype(jnp.float32)  # (L, k)
        w_eff_b = jnp.einsum("jk,kdc->jdc", valid, wt) / float(h_out)           # (L, D, 128)
        w_eff_branches.append(w_eff_b.reshape(LD, N_FILTERS))
    w_eff = jnp.concatenate(w_eff_branches, axis=1)                             # (LD, 640)
    if ld_pad != LD:
        # Zero rows: the lane-padding columns added to x contribute nothing.
        w_eff = jnp.pad(w_eff, ((0, ld_pad - LD), (0, 0)))
    b_conv = jnp.concatenate([b.astype(jnp.float32) for b in params["conv_b"]])  # (640,)

    outdim = params["w2"].shape[0]
    out_pad = _round_up(max(outdim, LANE), LANE)     # lane-dense output tile
    w2 = jnp.zeros((HID, out_pad), jnp.float32).at[:, :outdim].set(params["w2"].T)
    b2 = jnp.zeros((out_pad,), jnp.float32).at[:outdim].set(params["b2"])

    return {
        "w_eff": w_eff.astype(MATMUL_DTYPE),                       # (ld_pad, 640) bf16
        "b_conv": b_conv.reshape(1, FEAT),                         # (1, 640)      f32
        "w1": params["w1"].T.astype(MATMUL_DTYPE),                 # (640, 256)    bf16
        "b1": params["b1"].astype(jnp.float32).reshape(1, HID),    # (1, 256)      f32
        "w2": w2.astype(MATMUL_DTYPE),                             # (256, out_pad) bf16
        "b2": b2.reshape(1, out_pad),                              # (1, out_pad)   f32
        "outdim": outdim,
        "seq_len": L,
        "ndim": D,
        "ld_pad": ld_pad,
        "tk": tk,
        "num_k": num_k,
    }


def _vmem_estimate(tb, tk, num_k, out_pad, resident_bytes, weff_tile_bytes):
    """Conservative per-call VMEM estimate used to size the batch tile."""
    per_row = (2 * tk * 4              # f32 x tile, double-buffered
               + tk * 2                # in-kernel bf16 cast of the x tile
               + FEAT * 4              # f32 accumulator scratch
               + FEAT * 2              # bf16 feat
               + HID * 4 + HID * 2     # h1 f32 + bf16
               + out_pad * 4           # h2 / tanh temp
               + 2 * out_pad * 4)      # f32 out tile, double-buffered
    weff = (1 if num_k == 1 else 2) * weff_tile_bytes
    return tb * per_row + weff + resident_bytes


def cnn_word_to_image_projector(x, prepared, *, batch_tile=None):
    """x: (B, 1, L, ndim) NCHW float32, C == 1 (as the PyTorch module expects)."""
    B, C, L, D = x.shape
    assert C == 1 and L == prepared["seq_len"] and D == prepared["ndim"]
    LD = L * D
    ld_pad, tk, num_k = prepared["ld_pad"], prepared["tk"], prepared["num_k"]
    out_pad = prepared["w2"].shape[1]

    weights = (prepared["w_eff"], prepared["b_conv"], prepared["w1"],
               prepared["b1"], prepared["w2"], prepared["b2"])
    weff_tile_bytes = tk * FEAT * prepared["w_eff"].dtype.itemsize
    resident_bytes = sum(int(w.size) * w.dtype.itemsize for w in weights[1:])

    # --- batch tiling: VMEM-aware cap, minimal padding, >=2 parallel steps for
    #     v7x's two TensorCores when the batch is big enough to split. ---
    if batch_tile is not None:
        assert batch_tile % 16 == 0, \
            "batch_tile must be a multiple of 16 (bf16 sublane pack)"
        tb = batch_tile
        num_b = _cdiv(B, tb)
    else:
        cap = 16
        for cand in (4096, 2048, 1024, 512, 384, 256, 128, 64, 32, 16):
            if _vmem_estimate(cand, tk, num_k, out_pad, resident_bytes,
                              weff_tile_bytes) <= VMEM_BUDGET_BYTES:
                cap = cand
                break
        num_b = _cdiv(B, cap)
        if num_b == 1 and B >= 2 * LANE:
            num_b = 2                  # keep both v7x TensorCores busy
        tb = _round_up(_cdiv(B, num_b), 16)
    b_pad = tb * num_b
    assert _vmem_estimate(tb, tk, num_k, out_pad, resident_bytes,
                          weff_tile_bytes) <= VMEM_LIMIT_BYTES, \
        "resident weights + tiles do not fit the scoped VMEM limit; lower batch_tile"

    # x stays f32 end-to-end in the wrapper (no extra bf16 HBM pass); the bf16
    # cast for the MXU happens in-kernel on the VMEM tile.  Pads are only
    # materialized when actually needed.
    x_flat = x[:, 0, :, :].reshape(B, LD)
    if ld_pad != LD:
        x_flat = jnp.pad(x_flat, ((0, 0), (0, ld_pad - LD)))   # lane-dense K axis
    if b_pad != B:
        x_flat = jnp.pad(x_flat, ((0, b_pad - B), (0, 0)))

    flops = 2 * b_pad * (ld_pad * FEAT + FEAT * HID + HID * out_pad)
    bytes_accessed = (b_pad * ld_pad * 4
                      + weff_tile_bytes * num_k + resident_bytes
                      + b_pad * out_pad * 4)

    out = pl.pallas_call(
        _projector_kernel,
        out_shape=jax.ShapeDtypeStruct((b_pad, out_pad), jnp.float32),
        grid=(num_b, num_k),
        in_specs=[
            pl.BlockSpec((tb, tk), lambda i, k: (i, k)),                  # x (f32)
            _block_spec((tk, FEAT), lambda i, k: (k, 0),
                        buffers=1 if num_k == 1 else None),               # w_eff
            _block_spec((1, FEAT), lambda i, k: (0, 0), buffers=1),       # conv bias
            _block_spec((FEAT, HID), lambda i, k: (0, 0), buffers=1),     # w1
            _block_spec((1, HID), lambda i, k: (0, 0), buffers=1),        # b1
            _block_spec((HID, out_pad), lambda i, k: (0, 0), buffers=1),  # w2
            _block_spec((1, out_pad), lambda i, k: (0, 0), buffers=1),    # b2
        ],
        out_specs=pl.BlockSpec((tb, out_pad), lambda i, k: (i, 0)),
        scratch_shapes=[pltpu.VMEM((tb, FEAT), jnp.float32)],
        compiler_params=pltpu.CompilerParams(
            dimension_semantics=("parallel", "arbitrary"),
            vmem_limit_bytes=VMEM_LIMIT_BYTES),
        cost_estimate=pl.CostEstimate(flops=flops,
                                      transcendentals=b_pad * out_pad,
                                      bytes_accessed=bytes_accessed),
    )(x_flat, *weights)
    return out[:B, :prepared["outdim"]]


def reference(x, params):
    """Pure-JAX reference following the PyTorch forward literally (f32 HIGHEST)."""
    feats = []
    for (k, p), w, b in zip(CONV_SPECS, params["conv_w"], params["conv_b"]):
        y = jax.lax.conv_general_dilated(
            x, w, window_strides=(1, 1), padding=((p, p), (0, 0)),
            dimension_numbers=("NCHW", "OIHW", "NCHW"),
            precision=jax.lax.Precision.HIGHEST)
        y = y + b[None, :, None, None]
        feats.append(jnp.mean(y, axis=(2, 3)))                      # AdaptiveAvgPool2d(1)
    feat = jax.nn.relu(jnp.concatenate(feats, axis=1))
    h1 = jax.nn.relu(
        jnp.dot(feat, params["w1"].T, precision=jax.lax.Precision.HIGHEST)
        + params["b1"])
    h2 = jnp.dot(h1, params["w2"].T, precision=jax.lax.Precision.HIGHEST) + params["b2"]
    return jnp.tanh(h2)


if __name__ == "__main__":
    ndim, outdim = 32, 32          # small, consistent with the module's (ndim, outdim)
    B, L = 2, 8                    # batch=2, seq(words)=8

    key = jax.random.PRNGKey(0)
    keys = jax.random.split(key, 16)
    params = {"conv_w": [], "conv_b": []}
    ki = 0
    for k, p in CONV_SPECS:
        params["conv_w"].append(
            0.1 * jax.random.normal(keys[ki], (N_FILTERS, 1, k, ndim), jnp.float32)); ki += 1
        params["conv_b"].append(
            0.1 * jax.random.normal(keys[ki], (N_FILTERS,), jnp.float32)); ki += 1
    params["w1"] = 0.05 * jax.random.normal(keys[ki], (HID, FEAT), jnp.float32); ki += 1
    params["b1"] = 0.05 * jax.random.normal(keys[ki], (HID,), jnp.float32); ki += 1
    params["w2"] = 0.05 * jax.random.normal(keys[ki], (outdim, HID), jnp.float32); ki += 1
    params["b2"] = 0.05 * jax.random.normal(keys[ki], (outdim,), jnp.float32); ki += 1

    x = jax.random.normal(keys[ki], (B, 1, L, ndim), jnp.float32)

    # One-time weight preprocessing (hoisted out of the per-call hot path).
    prepared = prepare_params(params, seq_len=L, ndim=ndim)
    run = jax.jit(functools.partial(cnn_word_to_image_projector, prepared=prepared))

    out = jax.block_until_ready(run(x))
    ref = jax.block_until_ready(reference(x, params))
    assert out.shape == (B, outdim)
    # Tolerance reflects bf16 MXU operands with f32 accumulation vs. an
    # f32-HIGHEST reference; a semantic/offset bug would show errors >> this.
    np.testing.assert_allclose(np.asarray(out), np.asarray(ref), atol=2e-2, rtol=2e-2)
    print("KERNEL_OK")
</pallas_src>

<mosaic_0001>
module attributes {stable_mosaic.version = 11 : i64} {
  func.func @_projector_kernel(%arg0: i32, %arg1: i32, %arg2: memref<16x256xf32, #tpu.memory_space<vmem>>, %arg3: memref<256x640xbf16, #tpu.memory_space<vmem>>, %arg4: memref<1x640xf32, #tpu.memory_space<vmem>>, %arg5: memref<640x256xbf16, #tpu.memory_space<vmem>>, %arg6: memref<1x256xf32, #tpu.memory_space<vmem>>, %arg7: memref<256x128xbf16, #tpu.memory_space<vmem>>, %arg8: memref<1x128xf32, #tpu.memory_space<vmem>>, %arg9: memref<16x128xf32, #tpu.memory_space<vmem>>, %arg10: memref<16x640xf32, #tpu.memory_space<vmem>>) attributes {dimension_semantics = [#tpu.dimension_semantics<parallel>, #tpu.dimension_semantics<arbitrary>], iteration_bounds = array<i64: 1, 1>, scalar_prefetch = 0 : i64, scratch_operands = 1 : i64, tpu.core_type = #tpu.core_type<tc>, window_params = [{transform_indices = @transform_0, window_bounds = array<i64: 16, 256>}, {pipeline_mode = #tpu.pipeline_mode<synchronous>, transform_indices = @transform_1, window_bounds = array<i64: 256, 640>}, {pipeline_mode = #tpu.pipeline_mode<synchronous>, transform_indices = @transform_2, window_bounds = array<i64: 1, 640>}, {pipeline_mode = #tpu.pipeline_mode<synchronous>, transform_indices = @transform_3, window_bounds = array<i64: 640, 256>}, {pipeline_mode = #tpu.pipeline_mode<synchronous>, transform_indices = @transform_4, window_bounds = array<i64: 1, 256>}, {pipeline_mode = #tpu.pipeline_mode<synchronous>, transform_indices = @transform_5, window_bounds = array<i64: 256, 128>}, {pipeline_mode = #tpu.pipeline_mode<synchronous>, transform_indices = @transform_6, window_bounds = array<i64: 1, 128>}, {transform_indices = @transform_7, window_bounds = array<i64: 16, 128>}]} {
    %c0_i32 = arith.constant 0 : i32
    %0 = arith.cmpi eq, %arg1, %c0_i32 : i32
    %1 = arith.extui %0 : i1 to i32
    %c0_i32_0 = arith.constant 0 : i32
    %2 = arith.cmpi ne, %1, %c0_i32_0 : i32
    scf.if %2 {
      %cst_10 = arith.constant 0.000000e+00 : f32
      %13 = vector.broadcast %cst_10 : f32 to vector<16x640xf32>
      %c0_11 = arith.constant 0 : index
      %c0_12 = arith.constant 0 : index
      %14 = vector.load %arg10[%c0_11, %c0_12] : memref<16x640xf32, #tpu.memory_space<vmem>>, vector<16x640xf32>
      tpu.vector_store %arg10[%c0_11, %c0_12], %13 {strides = array<i32>} : memref<16x640xf32, #tpu.memory_space<vmem>>, vector<16x640xf32>,
    } else {
    }
    %c0 = arith.constant 0 : index
    %c0_1 = arith.constant 0 : index
    %3 = vector.load %arg10[%c0, %c0_1] : memref<16x640xf32, #tpu.memory_space<vmem>>, vector<16x640xf32>
    %c0_2 = arith.constant 0 : index
    %c0_3 = arith.constant 0 : index
    %4 = vector.load %arg2[%c0_2, %c0_3] : memref<16x256xf32, #tpu.memory_space<vmem>>, vector<16x256xf32>
    %5 = arith.truncf %4 : vector<16x256xf32> to vector<16x256xbf16>
    %c0_4 = arith.constant 0 : index
    %c0_5 = arith.constant 0 : index
    %6 = vector.load %arg3[%c0_4, %c0_5] : memref<256x640xbf16, #tpu.memory_space<vmem>>, vector<256x640xbf16>
    %cst = arith.constant dense<0.000000e+00> : vector<16x640xf32>
    %7 = tpu.matmul %5, %6, %cst {dimension_numbers = #tpu.dot_dimension_numbers<[1], [0], [0], [1], [0, 0, 1, 1], [], []>} : vector<16x256xbf16>, vector<256x640xbf16>, vector<16x640xf32> -> vector<16x640xf32>
    %8 = arith.addf %3, %7 : vector<16x640xf32>
    %c0_6 = arith.constant 0 : index
    %c0_7 = arith.constant 0 : index
    %9 = vector.load %arg10[%c0_6, %c0_7] : memref<16x640xf32, #tpu.memory_space<vmem>>, vector<16x640xf32>
    tpu.vector_store %arg10[%c0_6, %c0_7], %8 {strides = array<i32>} : memref<16x640xf32, #tpu.memory_space<vmem>>, vector<16x640xf32>,
    %c0_i32_8 = arith.constant 0 : i32
    %10 = arith.cmpi eq, %arg1, %c0_i32_8 : i32
    %11 = arith.extui %10 : i1 to i32
    %c0_i32_9 = arith.constant 0 : i32
    %12 = arith.cmpi ne, %11, %c0_i32_9 : i32
    scf.if %12 {
      %c0_10 = arith.constant 0 : index
      %c0_11 = arith.constant 0 : index
      %13 = vector.load %arg10[%c0_10, %c0_11] : memref<16x640xf32, #tpu.memory_space<vmem>>, vector<16x640xf32>
      %c0_12 = arith.constant 0 : index
      %c0_13 = arith.constant 0 : index
      %14 = vector.load %arg4[%c0_12, %c0_13] : memref<1x640xf32, #tpu.memory_space<vmem>>, vector<1x640xf32>
      %15 = vector.broadcast %14 : vector<1x640xf32> to vector<16x640xf32>
      %16 = arith.addf %13, %15 : vector<16x640xf32>
      %cst_14 = arith.constant 0.000000e+00 : f32
      %17 = vector.broadcast %cst_14 : f32 to vector<16x640xf32>
      %18 = arith.maximumf %16, %17 : vector<16x640xf32>
      %19 = arith.truncf %18 : vector<16x640xf32> to vector<16x640xbf16>
      %c0_15 = arith.constant 0 : index
      %c0_16 = arith.constant 0 : index
      %20 = vector.load %arg5[%c0_15, %c0_16] : memref<640x256xbf16, #tpu.memory_space<vmem>>, vector<640x256xbf16>
      %cst_17 = arith.constant dense<0.000000e+00> : vector<16x256xf32>
      %21 = tpu.matmul %19, %20, %cst_17 {dimension_numbers = #tpu.dot_dimension_numbers<[1], [0], [0], [1], [0, 0, 1, 1], [], []>} : vector<16x640xbf16>, vector<640x256xbf16>, vector<16x256xf32> -> vector<16x256xf32>
      %c0_18 = arith.constant 0 : index
      %c0_19 = arith.constant 0 : index
      %22 = vector.load %arg6[%c0_18, %c0_19] : memref<1x256xf32, #tpu.memory_space<vmem>>, vector<1x256xf32>
      %23 = vector.broadcast %22 : vector<1x256xf32> to vector<16x256xf32>
      %24 = arith.addf %21, %23 : vector<16x256xf32>
      %cst_20 = arith.constant 0.000000e+00 : f32
      %25 = vector.broadcast %cst_20 : f32 to vector<16x256xf32>
      %26 = arith.maximumf %24, %25 : vector<16x256xf32>
      %27 = arith.truncf %26 : vector<16x256xf32> to vector<16x256xbf16>
      %c0_21 = arith.constant 0 : index
      %c0_22 = arith.constant 0 : index
      %28 = vector.load %arg7[%c0_21, %c0_22] : memref<256x128xbf16, #tpu.memory_space<vmem>>, vector<256x128xbf16>
      %cst_23 = arith.constant dense<0.000000e+00> : vector<16x128xf32>
      %29 = tpu.matmul %27, %28, %cst_23 {dimension_numbers = #tpu.dot_dimension_numbers<[1], [0], [0], [1], [0, 0, 1, 1], [], []>} : vector<16x256xbf16>, vector<256x128xbf16>, vector<16x128xf32> -> vector<16x128xf32>
      %c0_24 = arith.constant 0 : index
      %c0_25 = arith.constant 0 : index
      %30 = vector.load %arg8[%c0_24, %c0_25] : memref<1x128xf32, #tpu.memory_space<vmem>>, vector<1x128xf32>
      %31 = vector.broadcast %30 : vector<1x128xf32> to vector<16x128xf32>
      %32 = arith.addf %29, %31 : vector<16x128xf32>
      %33 = math.tanh %32 : vector<16x128xf32>
      %c0_26 = arith.constant 0 : index
      %c0_27 = arith.constant 0 : index
      %34 = vector.load %arg9[%c0_26, %c0_27] : memref<16x128xf32, #tpu.memory_space<vmem>>, vector<16x128xf32>
      tpu.vector_store %arg9[%c0_26, %c0_27], %33 {strides = array<i32>} : memref<16x128xf32, #tpu.memory_space<vmem>>, vector<16x128xf32>,
    } else {
    }
    return
  }
  func.func @transform_0(%arg0: i32, %arg1: i32) -> (i32, i32) {
    %c0_i32 = arith.constant 0 : i32
    return %arg0, %arg1 : i32, i32
  }
  func.func @transform_1(%arg0: i32, %arg1: i32) -> (i32, i32) {
    %c0_i32 = arith.constant 0 : i32
    %c0_i32_0 = arith.constant 0 : i32
    return %arg1, %c0_i32 : i32, i32
  }
  func.func @transform_2(%arg0: i32, %arg1: i32) -> (i32, i32) {
    %c0_i32 = arith.constant 0 : i32
    %c0_i32_0 = arith.constant 0 : i32
    %c0_i32_1 = arith.constant 0 : i32
    return %c0_i32, %c0_i32_0 : i32, i32
  }
  func.func @transform_3(%arg0: i32, %arg1: i32) -> (i32, i32) {
    %c0_i32 = arith.constant 0 : i32
    %c0_i32_0 = arith.constant 0 : i32
    %c0_i32_1 = arith.constant 0 : i32
    return %c0_i32, %c0_i32_0 : i32, i32
  }
  func.func @transform_4(%arg0: i32, %arg1: i32) -> (i32, i32) {
    %c0_i32 = arith.constant 0 : i32
    %c0_i32_0 = arith.constant 0 : i32
    %c0_i32_1 = arith.constant 0 : i32
    return %c0_i32, %c0_i32_0 : i32, i32
  }
  func.func @transform_5(%arg0: i32, %arg1: i32) -> (i32, i32) {
    %c0_i32 = arith.constant 0 : i32
    %c0_i32_0 = arith.constant 0 : i32
    %c0_i32_1 = arith.constant 0 : i32
    return %c0_i32, %c0_i32_0 : i32, i32
  }
  func.func @transform_6(%arg0: i32, %arg1: i32) -> (i32, i32) {
    %c0_i32 = arith.constant 0 : i32
    %c0_i32_0 = arith.constant 0 : i32
    %c0_i32_1 = arith.constant 0 : i32
    return %c0_i32, %c0_i32_0 : i32, i32
  }
  func.func @transform_7(%arg0: i32, %arg1: i32) -> (i32, i32) {
    %c0_i32 = arith.constant 0 : i32
    %c0_i32_0 = arith.constant 0 : i32
    return %arg0, %c0_i32 : i32, i32
  }
}

</mosaic_0001>

<llo_original>
// kernel: squeeze.1
$region0: #{squeeze.1}
  %s0 = inlined_call_operand.hbm [shape: f32[2,1,8,32], index: 0, kind: input, shape index: {}]
  %s1 = inlined_call_operand.vmem [shape: f32[2,256], index: 1, kind: output, shape index: {}]
  $region1: #{squeeze.1} parent=0
    #allocation0 [shape = 'u8[8192]{0}', space=vmem, size = 0x2000, scoped, tag = 'operand span for operand 0']
    #allocation1 [shape = 's32[1]{0}', space=sflag, size = 0x4, scoped, tag = 'scoped memory for squeeze.1']
    #allocation2 [shape = 'u8[8192]{0}', space=vmem, size = 0x2000, scoped, tag = 'scoped mem for output reshape']
    %2 = vsyncpa [#allocation1], 0
    %4 = vsyncadd [#allocation1], 0
    %s6 = sshll.u32 %s0, 4
    %s7 = int_to_ptr.hbm [resolvable:$true] %s6
    %s8 = sshll.u32 [#allocation0], 4
    %s9 = int_to_ptr.vmem [resolvable:$true] %s8
    %11 = dma.hbm_to_vmem [thread:$0]  %s7, 256, %s9, [#allocation1]
    %13 = dma.done [#allocation1], 256
    %v14 = vld [vmem:[#allocation0] ss:$4 sm:$0xf]
    %vm15 = vcmask 261120
    %16 = vst.msk [vmem:[#allocation2] ss:$8 sm:$0x3] %vm15, %v14
    %s17 = scalar_lea.vmem [#allocation2], 4294967281
    %18 = vst.msk [vmem:[%s17] ss:$8 sm:$0xc] %vm15, %v14
    %s19 = scalar_lea.vmem [#allocation0], 3
    %v20 = vld.sshfl [vmem:[%s19] sm:$0xff pattern:$0xccccc480]
    %21 = vrot.lane.b32.xlu0 %v20, 96
    %v22 = vpop.permute.xlu0 %21
    %vm23 = vcmask 1048320
    %24 = vst.msk [vmem:[#allocation2] sm:$0x3] %vm23, %v22
    %s25 = scalar_lea.vmem [#allocation2], 6
    %26 = vst.msk [vmem:[%s25] sm:$0xc] %vm23, %v22
    %s27 = scalar_lea.vmem [#allocation0], 2
    %v28 = vld.sshfl [vmem:[%s27] sm:$0xff pattern:$0xccccc480]
    %29 = vrot.lane.b32.xlu0 %v28, 64
    %v30 = vpop.permute.xlu0 %29
    %vm31 = vcmask 785920
    %32 = vst.msk [vmem:[#allocation2] sm:$0x3] %vm31, %v30
    %s33 = scalar_lea.vmem [#allocation2], 6
    %34 = vst.msk [vmem:[%s33] sm:$0xc] %vm31, %v30
    %s35 = scalar_lea.vmem [#allocation0], 1
    %v36 = vld.sshfl [vmem:[%s35] sm:$0xff pattern:$0xccccc480]
    %37 = vrot.lane.b32.xlu0 %v36, 32
    %v38 = vpop.permute.xlu0 %37
    %vm39 = vcmask 523520
    %40 = vst.msk [vmem:[#allocation2] sm:$0x3] %vm39, %v38
    %s41 = scalar_lea.vmem [#allocation2], 6
    %42 = vst.msk [vmem:[%s41] sm:$0xc] %vm39, %v38
    %s44 = ssub.s32 4, 1
    %v45 = vld [vmem:[#allocation2] sm:%s44]
    %s47 = ssub.s32 4, 1
    %48 = vst [vmem:[%s1] sm:%s47] %v45
    %s49 = scalar_lea.vmem [#allocation2], 8
    %v50 = vld [vmem:[%s49] sm:%s44]
    %s52 = ssub.s32 4, 1
    %s53 = scalar_lea.vmem %s1, 2
    %54 = vst [vmem:[%s53] sm:%s52] %v50
    %55 = vsyncpa [#allocation1], 1

// kernel: cnn_word_to_image_projector.1
$region0: #{cnn_word_to_image_projector.1}
  #allocation0 [shape = 'u32[]', space=smem, size = 0x4, offset = 0x4, fixed_abs, tag = 'smem constant byte address 0x4 - core index']
  #allocation1 [shape = 'u32[72,128]{1,0:T(1,128)}', space=vmem, size = 0x9000, scoped, tag = 'internal scratch']
  #allocation2 [shape = 'f32[16,640]{1,0:T(8,128)}', space=vmem, size = 0xa000, scoped, tag = 'scratch operand']
  %s0 = inlined_call_operand.vmem [shape: f32[16,256], index: 0, kind: input, shape index: {}]
  %s1 = inlined_call_operand.hbm [shape: bf16[256,640], index: 1, kind: input, shape index: {}]
  %s2 = inlined_call_operand.vmem [shape: f32[1,640], index: 2, kind: input, shape index: {}]
  %s3 = inlined_call_operand.hbm [shape: bf16[640,256], index: 3, kind: input, shape index: {}]
  %s4 = inlined_call_operand.vmem [shape: f32[1,256], index: 4, kind: input, shape index: {}]
  %s5 = inlined_call_operand.hbm [shape: bf16[256,128], index: 5, kind: input, shape index: {}]
  %s6 = inlined_call_operand.vmem [shape: f32[1,128], index: 6, kind: input, shape index: {}]
  %s7 = inlined_call_operand.vmem [shape: f32[16,128], index: 7, kind: output, shape index: {}]
  %s8 = sld [smem:[#allocation0]]
  $region58: #{cnn_word_to_image_projector.1} parent=0
    _
  %s10 = ssub.s32 1, %s8
  %s11 = scalar_select 0, %s10, %s8
  $region1: #{cnn_word_to_image_projector.1} parent=0
    #allocation3 [shape = 'u8[327680]{0}', space=vmem, size = 0x50000, scoped, tag = 'input window, operand 1, single buffered']
    #allocation4 [shape = 's32[1]{0}', space=sflag, size = 0x4, scoped, tag = 'scoped memory for cnn_word_to_image_projector.1']
    #allocation5 [shape = 'u8[327680]{0}', space=vmem, size = 0x50000, scoped, tag = 'input window, operand 3, single buffered']
    #allocation6 [shape = 's32[1]{0}', space=sflag, size = 0x4, scoped, tag = 'scoped memory for cnn_word_to_image_projector.1']
    #allocation7 [shape = 'u8[65536]{0}', space=vmem, size = 0x10000, scoped, tag = 'input window, operand 5, single buffered']
    %12 = vsyncpa [#allocation4], 0
    %13 = vsyncpa [#allocation6], 0
    // Predicated region
    $region2: #{cnn_word_to_image_projector.1} parent=1 // pred_check
      _
    $region3: #{cnn_word_to_image_projector.1} parent=1 // pred_check_branch
      %15 = sbr.rel (0) target = $region5
    $region4: #{cnn_word_to_image_projector.1} parent=1 // pred_region
      _
    $region5: #{cnn_word_to_image_projector.1} parent=1 // pred_fallthru
      _
    // Predicated region
    $region6: #{cnn_word_to_image_projector.1} parent=1 // pred_check
      _
    $region7: #{cnn_word_to_image_projector.1} parent=1 // pred_check_branch
      %17 = sbr.rel (0) target = $region9
    $region8: #{cnn_word_to_image_projector.1} parent=1 // pred_region
      %19 = vsyncadd [#allocation4], 0
      %s20 = sshll.u32 %s1, 4
      %s21 = int_to_ptr.hbm [resolvable:$true] %s20
      %s22 = sshll.u32 [#allocation3], 4
      %s23 = int_to_ptr.vmem [resolvable:$true] %s22
      %28 = dma.hbm_to_vmem [thread:$0]  %s21, 10240, %s23, [#allocation4], 320, 320, 20
    $region9: #{cnn_word_to_image_projector.1} parent=1 // pred_fallthru
      _
    // Predicated region
    $region10: #{cnn_word_to_image_projector.1} parent=1 // pred_check
      _
    $region11: #{cnn_word_to_image_projector.1} parent=1 // pred_check_branch
      %30 = sbr.rel (0) target = $region13
    $region12: #{cnn_word_to_image_projector.1} parent=1 // pred_region
      _
    $region13: #{cnn_word_to_image_projector.1} parent=1 // pred_fallthru
      _
    // Predicated region
    $region14: #{cnn_word_to_image_projector.1} parent=1 // pred_check
      _
    $region15: #{cnn_word_to_image_projector.1} parent=1 // pred_check_branch
      %32 = sbr.rel (0) target = $region17
    $region16: #{cnn_word_to_image_projector.1} parent=1 // pred_region
      %34 = vsyncadd [#allocation6], 0
      %s35 = sshll.u32 %s3, 4
      %s36 = int_to_ptr.hbm [resolvable:$true] %s35
      %s37 = sshll.u32 [#allocation5], 4
      %s38 = int_to_ptr.vmem [resolvable:$true] %s37
      %43 = dma.hbm_to_vmem [thread:$0]  %s36, 10240, %s38, [#allocation6], 128, 128, 8
    $region17: #{cnn_word_to_image_projector.1} parent=1 // pred_fallthru
      _
    // Predicated region
    $region18: #{cnn_word_to_image_projector.1} parent=1 // pred_check
      _
    $region19: #{cnn_word_to_image_projector.1} parent=1 // pred_check_branch
      %45 = sbr.rel (0) target = $region21
    $region20: #{cnn_word_to_image_projector.1} parent=1 // pred_region
      _
    $region21: #{cnn_word_to_image_projector.1} parent=1 // pred_fallthru
      _
    // Predicated region
    $region22: #{cnn_word_to_image_projector.1} parent=1 // pred_check
      _
    $region23: #{cnn_word_to_image_projector.1} parent=1 // pred_check_branch
      %47 = sbr.rel (0) target = $region25
    $region24: #{cnn_word_to_image_projector.1} parent=1 // pred_region
      %49 = vsyncadd [#allocation6], 0
      %s50 = sshll.u32 %s5, 4
      %s51 = int_to_ptr.hbm [resolvable:$true] %s50
      %s52 = sshll.u32 [#allocation7], 4
      %s53 = int_to_ptr.vmem [resolvable:$true] %s52
      %58 = dma.hbm_to_vmem [thread:$0]  %s51, 2048, %s53, [#allocation6], 64, 64, 4
    $region25: #{cnn_word_to_image_projector.1} parent=1 // pred_fallthru
      _
    // Predicated region
    $region26: #{cnn_word_to_image_projector.1} parent=1 // pred_check
      _
    $region27: #{cnn_word_to_image_projector.1} parent=1 // pred_check_branch
      %60 = sbr.rel (0) target = $region29
    $region28: #{cnn_word_to_image_projector.1} parent=1 // pred_region
      _
    $region29: #{cnn_word_to_image_projector.1} parent=1 // pred_fallthru
      _
    // Predicated region
    $region30: #{cnn_word_to_image_projector.1} parent=1 // pred_check
      _
    $region31: #{cnn_word_to_image_projector.1} parent=1 // pred_check_branch
      %62 = sbr.rel (0) target = $region33
    $region32: #{cnn_word_to_image_projector.1} parent=1 // pred_region
      %64 = dma.done [#allocation4], 10240
    $region33: #{cnn_word_to_image_projector.1} parent=1 // pred_fallthru
      _
    // Predicated region
    $region34: #{cnn_word_to_image_projector.1} parent=1 // pred_check
      _
    $region35: #{cnn_word_to_image_projector.1} parent=1 // pred_check_branch
      %66 = sbr.rel (0) target = $region37
    $region36: #{cnn_word_to_image_projector.1} parent=1 // pred_region
      %68 = dma.done [#allocation6], 10240
    $region37: #{cnn_word_to_image_projector.1} parent=1 // pred_fallthru
      _
    // Predicated region
    $region38: #{cnn_word_to_image_projector.1} parent=1 // pred_check
      _
    $region39: #{cnn_word_to_image_projector.1} parent=1 // pred_check_branch
      %70 = sbr.rel (0) target = $region41
    $region40: #{cnn_word_to_image_projector.1} parent=1 // pred_region
      %72 = dma.done [#allocation6], 2048
    $region41: #{cnn_word_to_image_projector.1} parent=1 // pred_fallthru
      _
    %p73 = scmp.eq.s32.totalorder 0, 0
    // Predicated region
    $region42: #{cnn_word_to_image_projector.1} parent=1 // pred_check
      %p74 = pneg %p73
    $region43: #{cnn_word_to_image_projector.1} parent=1 // pred_check_branch
      %76 = sbr.rel (%p74) target = $region45
    $region44: #{cnn_word_to_image_projector.1} parent=1 // pred_region
      %77 = vst [vmem:[#allocation2] sm:$0xff] 0.0
      %78 = vst [vmem:[#allocation2 + $0x8] sm:$0xff] 0.0
      %79 = vst [vmem:[#allocation2 + $0x10] sm:$0xff] 0.0
      %80 = vst [vmem:[#allocation2 + $0x18] sm:$0xff] 0.0
      %81 = vst [vmem:[#allocation2 + $0x20] sm:$0xff] 0.0
      %82 = vst [vmem:[#allocation2 + $0x28] sm:$0xff] 0.0
      %83 = vst [vmem:[#allocation2 + $0x30] sm:$0xff] 0.0
      %84 = vst [vmem:[#allocation2 + $0x38] sm:$0xff] 0.0
      %85 = vst [vmem:[#allocation2 + $0x40] sm:$0xff] 0.0
      %86 = vst [vmem:[#allocation2 + $0x48] sm:$0xff] 0.0
    $region45: #{cnn_word_to_image_projector.1} parent=1 // pred_fallthru
      _
    %v87 = vld [vmem:[#allocation2] sm:$0xff]
    %v88 = vld [vmem:[#allocation2 + $0x8] sm:$0xff]
    %v89 = vld [vmem:[#allocation2 + $0x10] sm:$0xff]
    %v90 = vld [vmem:[#allocation2 + $0x18] sm:$0xff]
    %v91 = vld [vmem:[#allocation2 + $0x20] sm:$0xff]
    %v92 = vld [vmem:[#allocation2 + $0x28] sm:$0xff]
    %v93 = vld [vmem:[#allocation2 + $0x30] sm:$0xff]
    %v94 = vld [vmem:[#allocation2 + $0x38] sm:$0xff]
    %v95 = vld [vmem:[#allocation2 + $0x40] sm:$0xff]
    %v96 = vld [vmem:[#allocation2 + $0x48] sm:$0xff]
    %v97 = vld [vmem:[%s0] sm:$0xff]
    %v98 = vld [vmem:[%s0 + $0x8] sm:$0xff]
    %v99 = vld [vmem:[%s0 + $0x10] sm:$0xff]
    %v100 = vld [vmem:[%s0 + $0x18] sm:$0xff]
    %v101 = vpack.c.bf16 %v99, %v97
    %v102 = vpack.c.bf16 %v100, %v98
    %v103 = vld [vmem:[#allocation3] sm:$0xff]
    %v104 = vld [vmem:[#allocation3 + $0x8] sm:$0xff]
    %v105 = vld [vmem:[#allocation3 + $0x10] sm:$0xf]
    %v106 = vld [vmem:[#allocation3 + $0x14] sm:$0xff]
    %v107 = vld [vmem:[#allocation3 + $0x1c] sm:$0xff]
    %v108 = vld [vmem:[#allocation3 + $0x24] sm:$0xf]
    %v109 = vld [vmem:[#allocation3 + $0x28] sm:$0xff]
    %v110 = vld [vmem:[#allocation3 + $0x30] sm:$0xff]
    %v111 = vld [vmem:[#allocation3 + $0x38] sm:$0xf]
    %v112 = vld [vmem:[#allocation3 + $0x3c] sm:$0xff]
    %v113 = vld [vmem:[#allocation3 + $0x44] sm:$0xff]
    %v114 = vld [vmem:[#allocation3 + $0x4c] sm:$0xf]
    %v115 = vld [vmem:[#allocation3 + $0x50] sm:$0xff]
    %v116 = vld [vmem:[#allocation3 + $0x58] sm:$0xff]
    %v117 = vld [vmem:[#allocation3 + $0x60] sm:$0xf]
    %v118 = vld [vmem:[#allocation3 + $0x64] sm:$0xff]
    %v119 = vld [vmem:[#allocation3 + $0x6c] sm:$0xff]
    %v120 = vld [vmem:[#allocation3 + $0x74] sm:$0xf]
    %v121 = vld [vmem:[#allocation3 + $0x78] sm:$0xff]
    %v122 = vld [vmem:[#allocation3 + $0x80] sm:$0xff]
    %v123 = vld [vmem:[#allocation3 + $0x88] sm:$0xf]
    %v124 = vld [vmem:[#allocation3 + $0x8c] sm:$0xff]
    %v125 = vld [vmem:[#allocation3 + $0x94] sm:$0xff]
    %v126 = vld [vmem:[#allocation3 + $0x9c] sm:$0xf]
    %v127 = vld [vmem:[#allocation3 + $0xa0] sm:$0xff]
    %v128 = vld [vmem:[#allocation3 + $0xa8] sm:$0xff]
    %v129 = vld [vmem:[#allocation3 + $0xb0] sm:$0xf]
    %v130 = vld [vmem:[#allocation3 + $0xb4] sm:$0xff]
    %v131 = vld [vmem:[#allocation3 + $0xbc] sm:$0xff]
    %v132 = vld [vmem:[#allocation3 + $0xc4] sm:$0xf]
    %v133 = vld [vmem:[#allocation3 + $0xc8] sm:$0xff]
    %v134 = vld [vmem:[#allocation3 + $0xd0] sm:$0xff]
    %v135 = vld [vmem:[#allocation3 + $0xd8] sm:$0xf]
    %v136 = vld [vmem:[#allocation3 + $0xdc] sm:$0xff]
    %v137 = vld [vmem:[#allocation3 + $0xe4] sm:$0xff]
    %v138 = vld [vmem:[#allocation3 + $0xec] sm:$0xf]
    %v139 = vld [vmem:[#allocation3 + $0xf0] sm:$0xff]
    %v140 = vld [vmem:[#allocation3 + $0xf8] sm:$0xff]
    %v141 = vld [vmem:[#allocation3 + $0x100] sm:$0xf]
    %v142 = vld [vmem:[#allocation3 + $0x104] sm:$0xff]
    %v143 = vld [vmem:[#allocation3 + $0x10c] sm:$0xff]
    %v144 = vld [vmem:[#allocation3 + $0x114] sm:$0xf]
    %v145 = vld [vmem:[#allocation3 + $0x118] sm:$0xff]
    %v146 = vld [vmem:[#allocation3 + $0x120] sm:$0xff]
    %v147 = vld [vmem:[#allocation3 + $0x128] sm:$0xf]
    %v148 = vld [vmem:[#allocation3 + $0x12c] sm:$0xff]
    %v149 = vld [vmem:[#allocation3 + $0x134] sm:$0xff]
    %v150 = vld [vmem:[#allocation3 + $0x13c] sm:$0xf]
    %v151 = vld [vmem:[#allocation3 + $0x140] sm:$0xff]
    %v152 = vld [vmem:[#allocation3 + $0x148] sm:$0xff]
    %v153 = vld [vmem:[#allocation3 + $0x150] sm:$0xf]
    %v154 = vld [vmem:[#allocation3 + $0x154] sm:$0xff]
    %v155 = vld [vmem:[#allocation3 + $0x15c] sm:$0xff]
    %v156 = vld [vmem:[#allocation3 + $0x164] sm:$0xf]
    %v157 = vld [vmem:[#allocation3 + $0x168] sm:$0xff]
    %v158 = vld [vmem:[#allocation3 + $0x170] sm:$0xff]
    %v159 = vld [vmem:[#allocation3 + $0x178] sm:$0xf]
    %v160 = vld [vmem:[#allocation3 + $0x17c] sm:$0xff]
    %v161 = vld [vmem:[#allocation3 + $0x184] sm:$0xff]
    %v162 = vld [vmem:[#allocation3 + $0x18c] sm:$0xf]
    %v163 = vld [vmem:[#allocation3 + $0x190] sm:$0xff]
    %v164 = vld [vmem:[#allocation3 + $0x198] sm:$0xff]
    %v165 = vld [vmem:[#allocation3 + $0x1a0] sm:$0xf]
    %v166 = vld [vmem:[#allocation3 + $0x1a4] sm:$0xff]
    %v167 = vld [vmem:[#allocation3 + $0x1ac] sm:$0xff]
    %v168 = vld [vmem:[#allocation3 + $0x1b4] sm:$0xf]
    %v169 = vld [vmem:[#allocation3 + $0x1b8] sm:$0xff]
    %v170 = vld [vmem:[#allocation3 + $0x1c0] sm:$0xff]
    %v171 = vld [vmem:[#allocation3 + $0x1c8] sm:$0xf]
    %v172 = vld [vmem:[#allocation3 + $0x1cc] sm:$0xff]
    %v173 = vld [vmem:[#allocation3 + $0x1d4] sm:$0xff]
    %v174 = vld [vmem:[#allocation3 + $0x1dc] sm:$0xf]
    %v175 = vld [vmem:[#allocation3 + $0x1e0] sm:$0xff]
    %v176 = vld [vmem:[#allocation3 + $0x1e8] sm:$0xff]
    %v177 = vld [vmem:[#allocation3 + $0x1f0] sm:$0xf]
    %v178 = vld [vmem:[#allocation3 + $0x1f4] sm:$0xff]
    %v179 = vld [vmem:[#allocation3 + $0x1fc] sm:$0xff]
    %v180 = vld [vmem:[#allocation3 + $0x204] sm:$0xf]
    %v181 = vld [vmem:[#allocation3 + $0x208] sm:$0xff]
    %v182 = vld [vmem:[#allocation3 + $0x210] sm:$0xff]
    %v183 = vld [vmem:[#allocation3 + $0x218] sm:$0xf]
    %v184 = vld [vmem:[#allocation3 + $0x21c] sm:$0xff]
    %v185 = vld [vmem:[#allocation3 + $0x224] sm:$0xff]
    %v186 = vld [vmem:[#allocation3 + $0x22c] sm:$0xf]
    %v187 = vld [vmem:[#allocation3 + $0x230] sm:$0xff]
    %v188 = vld [vmem:[#allocation3 + $0x238] sm:$0xff]
    %v189 = vld [vmem:[#allocation3 + $0x240] sm:$0xf]
    %v190 = vld [vmem:[#allocation3 + $0x244] sm:$0xff]
    %v191 = vld [vmem:[#allocation3 + $0x24c] sm:$0xff]
    %v192 = vld [vmem:[#allocation3 + $0x254] sm:$0xf]
    %v193 = vld [vmem:[#allocation3 + $0x258] sm:$0xff]
    %v194 = vld [vmem:[#allocation3 + $0x260] sm:$0xff]
    %v195 = vld [vmem:[#allocation3 + $0x268] sm:$0xf]
    %v196 = vld [vmem:[#allocation3 + $0x26c] sm:$0xff]
    %v197 = vld [vmem:[#allocation3 + $0x274] sm:$0xff]
    %v198 = vld [vmem:[#allocation3 + $0x27c] sm:$0xf]
    %v295 = vunpack.c.l.b16 %v103
    %v296 = vunpack.c.h.b16 %v103
    %v297 = vunpack.c.l.b16 %v104
    %v298 = vunpack.c.h.b16 %v104
    %v299 = vunpack.c.l.b16 %v105
    %v300 = vunpack.c.l.b16 %v106
    %v301 = vunpack.c.h.b16 %v106
    %v302 = vunpack.c.l.b16 %v107
    %v303 = vunpack.c.h.b16 %v107
    %v304 = vunpack.c.l.b16 %v108
    %v305 = vunpack.c.l.b16 %v109
    %v306 = vunpack.c.h.b16 %v109
    %v307 = vunpack.c.l.b16 %v110
    %v308 = vunpack.c.h.b16 %v110
    %v309 = vunpack.c.l.b16 %v111
    %v310 = vunpack.c.l.b16 %v112
    %v311 = vunpack.c.h.b16 %v112
    %v312 = vunpack.c.l.b16 %v113
    %v313 = vunpack.c.h.b16 %v113
    %v314 = vunpack.c.l.b16 %v114
    %v315 = vunpack.c.l.b16 %v115
    %v316 = vunpack.c.h.b16 %v115
    %v317 = vunpack.c.l.b16 %v116
    %v318 = vunpack.c.h.b16 %v116
    %v319 = vunpack.c.l.b16 %v117
    %v320 = vunpack.c.l.b16 %v118
    %v321 = vunpack.c.h.b16 %v118
    %v322 = vunpack.c.l.b16 %v119
    %v323 = vunpack.c.h.b16 %v119
    %v324 = vunpack.c.l.b16 %v120
    %v325 = vunpack.c.l.b16 %v121
    %v326 = vunpack.c.h.b16 %v121
    %v327 = vunpack.c.l.b16 %v122
    %v328 = vunpack.c.h.b16 %v122
    %v329 = vunpack.c.l.b16 %v123
    %v330 = vunpack.c.l.b16 %v124
    %v331 = vunpack.c.h.b16 %v124
    %v332 = vunpack.c.l.b16 %v125
    %v333 = vunpack.c.h.b16 %v125
    %v334 = vunpack.c.l.b16 %v126
    %v335 = vunpack.c.l.b16 %v127
    %v336 = vunpack.c.h.b16 %v127
    %v337 = vunpack.c.l.b16 %v128
    %v338 = vunpack.c.h.b16 %v128
    %v339 = vunpack.c.l.b16 %v129
    %v340 = vunpack.c.l.b16 %v130
    %v341 = vunpack.c.h.b16 %v130
    %v342 = vunpack.c.l.b16 %v131
    %v343 = vunpack.c.h.b16 %v131
    %v344 = vunpack.c.l.b16 %v132
    %v345 = vunpack.c.l.b16 %v133
    %v346 = vunpack.c.h.b16 %v133
    %v347 = vunpack.c.l.b16 %v134
    %v348 = vunpack.c.h.b16 %v134
    %v349 = vunpack.c.l.b16 %v135
    %v350 = vunpack.c.l.b16 %v136
    %v351 = vunpack.c.h.b16 %v136
    %v352 = vunpack.c.l.b16 %v137
    %v353 = vunpack.c.h.b16 %v137
    %v354 = vunpack.c.l.b16 %v138
    %v355 = vunpack.c.l.b16 %v139
    %v356 = vunpack.c.h.b16 %v139
    %v357 = vunpack.c.l.b16 %v140
    %v358 = vunpack.c.h.b16 %v140
    %v359 = vunpack.c.l.b16 %v141
    %v360 = vunpack.c.l.b16 %v142
    %v361 = vunpack.c.h.b16 %v142
    %v362 = vunpack.c.l.b16 %v143
    %v363 = vunpack.c.h.b16 %v143
    %v364 = vunpack.c.l.b16 %v144
    %v365 = vunpack.c.l.b16 %v145
    %v366 = vunpack.c.h.b16 %v145
    %v367 = vunpack.c.l.b16 %v146
    %v368 = vunpack.c.h.b16 %v146
    %v369 = vunpack.c.l.b16 %v147
    %v370 = vunpack.c.l.b16 %v148
    %v371 = vunpack.c.h.b16 %v148
    %v372 = vunpack.c.l.b16 %v149
    %v373 = vunpack.c.h.b16 %v149
    %v374 = vunpack.c.l.b16 %v150
    %v375 = vunpack.c.l.b16 %v151
    %v376 = vunpack.c.h.b16 %v151
    %v377 = vunpack.c.l.b16 %v152
    %v378 = vunpack.c.h.b16 %v152
    %v379 = vunpack.c.l.b16 %v153
    %v380 = vunpack.c.l.b16 %v154
    %v381 = vunpack.c.h.b16 %v154
    %v382 = vunpack.c.l.b16 %v155
    %v383 = vunpack.c.h.b16 %v155
    %v384 = vunpack.c.l.b16 %v156
    %v385 = vunpack.c.l.b16 %v157
    %v386 = vunpack.c.h.b16 %v157
    %v387 = vunpack.c.l.b16 %v158
    %v388 = vunpack.c.h.b16 %v158
    %v389 = vunpack.c.l.b16 %v159
    %v390 = vunpack.c.l.b16 %v160
    %v391 = vunpack.c.h.b16 %v160
    %v392 = vunpack.c.l.b16 %v161
    %v393 = vunpack.c.h.b16 %v161
    %v394 = vunpack.c.l.b16 %v162
    %v395 = vunpack.c.l.b16 %v163
    %v396 = vunpack.c.h.b16 %v163
    %v397 = vunpack.c.l.b16 %v164
    %v398 = vunpack.c.h.b16 %v164
    %v399 = vunpack.c.l.b16 %v165
    %v400 = vunpack.c.l.b16 %v166
    %v401 = vunpack.c.h.b16 %v166
    %v402 = vunpack.c.l.b16 %v167
    %v403 = vunpack.c.h.b16 %v167
    %v404 = vunpack.c.l.b16 %v168
    %v405 = vunpack.c.l.b16 %v169
    %v406 = vunpack.c.h.b16 %v169
    %v407 = vunpack.c.l.b16 %v170
    %v408 = vunpack.c.h.b16 %v170
    %v409 = vunpack.c.l.b16 %v171
    %v410 = vunpack.c.l.b16 %v172
    %v411 = vunpack.c.h.b16 %v172
    %v412 = vunpack.c.l.b16 %v173
    %v413 = vunpack.c.h.b16 %v173
    %v414 = vunpack.c.l.b16 %v174
    %v415 = vunpack.c.l.b16 %v175
    %v416 = vunpack.c.h.b16 %v175
    %v417 = vunpack.c.l.b16 %v176
    %v418 = vunpack.c.h.b16 %v176
    %v419 = vunpack.c.l.b16 %v177
    %v420 = vunpack.c.l.b16 %v178
    %v421 = vunpack.c.h.b16 %v178
    %v422 = vunpack.c.l.b16 %v179
    %v423 = vunpack.c.h.b16 %v179
    %v424 = vunpack.c.l.b16 %v180
    %v425 = vunpack.c.l.b16 %v181
    %v426 = vunpack.c.h.b16 %v181
    %v427 = vunpack.c.l.b16 %v182
    %v428 = vunpack.c.h.b16 %v182
    %v429 = vunpack.c.l.b16 %v183
    %v430 = vunpack.c.l.b16 %v184
    %v431 = vunpack.c.h.b16 %v184
    %v432 = vunpack.c.l.b16 %v185
    %v433 = vunpack.c.h.b16 %v185
    %v434 = vunpack.c.l.b16 %v186
    %v435 = vunpack.c.l.b16 %v187
    %v436 = vunpack.c.h.b16 %v187
    %v437 = vunpack.c.l.b16 %v188
    %v438 = vunpack.c.h.b16 %v188
    %v439 = vunpack.c.l.b16 %v189
    %v440 = vunpack.c.l.b16 %v190
    %v441 = vunpack.c.h.b16 %v190
    %v442 = vunpack.c.l.b16 %v191
    %v443 = vunpack.c.h.b16 %v191
    %v444 = vunpack.c.l.b16 %v192
    %v445 = vunpack.c.l.b16 %v193
    %v446 = vunpack.c.h.b16 %v193
    %v447 = vunpack.c.l.b16 %v194
    %v448 = vunpack.c.h.b16 %v194
    %v449 = vunpack.c.l.b16 %v195
    %v450 = vunpack.c.l.b16 %v196
    %v451 = vunpack.c.h.b16 %v196
    %v452 = vunpack.c.l.b16 %v197
    %v453 = vunpack.c.h.b16 %v197
    %v454 = vunpack.c.l.b16 %v198
    %v455 = vpack.c.b16 %v300, %v295
    %v456 = vpack.c.b16 %v301, %v296
    %v457 = vpack.c.b16 %v302, %v297
    %v458 = vpack.c.b16 %v303, %v298
    %v459 = vpack.c.b16 %v304, %v299
    %v460 = vpack.c.b16 %v310, %v305
    %v461 = vpack.c.b16 %v311, %v306
    %v462 = vpack.c.b16 %v312, %v307
    %v463 = vpack.c.b16 %v313, %v308
    %v464 = vpack.c.b16 %v314, %v309
    %v465 = vpack.c.b16 %v320, %v315
    %v466 = vpack.c.b16 %v321, %v316
    %v467 = vpack.c.b16 %v322, %v317
    %v468 = vpack.c.b16 %v323, %v318
    %v469 = vpack.c.b16 %v324, %v319
    %v470 = vpack.c.b16 %v330, %v325
    %v471 = vpack.c.b16 %v331, %v326
    %v472 = vpack.c.b16 %v332, %v327
    %v473 = vpack.c.b16 %v333, %v328
    %v474 = vpack.c.b16 %v334, %v329
    %v475 = vpack.c.b16 %v340, %v335
    %v476 = vpack.c.b16 %v341, %v336
    %v477 = vpack.c.b16 %v342, %v337
    %v478 = vpack.c.b16 %v343, %v338
    %v479 = vpack.c.b16 %v344, %v339
    %v480 = vpack.c.b16 %v350, %v345
    %v481 = vpack.c.b16 %v351, %v346
    %v482 = vpack.c.b16 %v352, %v347
    %v483 = vpack.c.b16 %v353, %v348
    %v484 = vpack.c.b16 %v354, %v349
    %v485 = vpack.c.b16 %v360, %v355
    %v486 = vpack.c.b16 %v361, %v356
    %v487 = vpack.c.b16 %v362, %v357
    %v488 = vpack.c.b16 %v363, %v358
    %v489 = vpack.c.b16 %v364, %v359
    %v490 = vpack.c.b16 %v370, %v365
    %v491 = vpack.c.b16 %v371, %v366
    %v492 = vpack.c.b16 %v372, %v367
    %v493 = vpack.c.b16 %v373, %v368
    %v494 = vpack.c.b16 %v374, %v369
    %v495 = vpack.c.b16 %v380, %v375
    %v496 = vpack.c.b16 %v381, %v376
    %v497 = vpack.c.b16 %v382, %v377
    %v498 = vpack.c.b16 %v383, %v378
    %v499 = vpack.c.b16 %v384, %v379
    %v500 = vpack.c.b16 %v390, %v385
    %v501 = vpack.c.b16 %v391, %v386
    %v502 = vpack.c.b16 %v392, %v387
    %v503 = vpack.c.b16 %v393, %v388
    %v504 = vpack.c.b16 %v394, %v389
    %v505 = vpack.c.b16 %v400, %v395
    %v506 = vpack.c.b16 %v401, %v396
    %v507 = vpack.c.b16 %v402, %v397
    %v508 = vpack.c.b16 %v403, %v398
    %v509 = vpack.c.b16 %v404, %v399
    %v510 = vpack.c.b16 %v410, %v405
    %v511 = vpack.c.b16 %v411, %v406
    %v512 = vpack.c.b16 %v412, %v407
    %v513 = vpack.c.b16 %v413, %v408
    %v514 = vpack.c.b16 %v414, %v409
    %v515 = vpack.c.b16 %v420, %v415
    %v516 = vpack.c.b16 %v421, %v416
    %v517 = vpack.c.b16 %v422, %v417
    %v518 = vpack.c.b16 %v423, %v418
    %v519 = vpack.c.b16 %v424, %v419
    %v520 = vpack.c.b16 %v430, %v425
    %v521 = vpack.c.b16 %v431, %v426
    %v522 = vpack.c.b16 %v432, %v427
    %v523 = vpack.c.b16 %v433, %v428
    %v524 = vpack.c.b16 %v434, %v429
    %v525 = vpack.c.b16 %v440, %v435
    %v526 = vpack.c.b16 %v441, %v436
    %v527 = vpack.c.b16 %v442, %v437
    %v528 = vpack.c.b16 %v443, %v438
    %v529 = vpack.c.b16 %v444, %v439
    %v530 = vpack.c.b16 %v450, %v445
    %v531 = vpack.c.b16 %v451, %v446
    %v532 = vpack.c.b16 %v452, %v447
    %v533 = vpack.c.b16 %v453, %v448
    %v534 = vpack.c.b16 %v454, %v449
    %615 = vmatpush.bf16.msra.mxu0 %v490
    %616 = vmatpush.bf16.msra.mxu0 %v485
    %617 = vmatpush.bf16.msra.mxu0 %v480
    %618 = vmatpush.bf16.msra.mxu0 %v475
    %619 = vmatpush.bf16.msra.mxu0 %v470
    %620 = vmatpush.bf16.msra.mxu0 %v465
    %621 = vmatpush.bf16.msra.mxu0 %v460
    %622 = vmatpush.bf16.msra.mxu0 %v455
    %623 = vmatmul.bf16.gmra.mxu0 %v101
    %v624 = vpop.f32.mrf.mxu0
    %v625 = vadd.f32 0.0, %v624
    %v626 = vpop.f32.mrf.mxu0
    %v627 = vadd.f32 0.0, %v626
    %628 = vdwg.mxu0
    %629 = vmatpush.bf16.msra.mxu0 %v530
    %630 = vmatpush.bf16.msra.mxu0 %v525
    %631 = vmatpush.bf16.msra.mxu0 %v520
    %632 = vmatpush.bf16.msra.mxu0 %v515
    %633 = vmatpush.bf16.msra.mxu0 %v510
    %634 = vmatpush.bf16.msra.mxu0 %v505
    %635 = vmatpush.bf16.msra.mxu0 %v500
    %636 = vmatpush.bf16.msra.mxu0 %v495
    %637 = vmatmul.bf16.gmra.mxu0 %v102
    %v638 = vpop.f32.mrf.mxu0
    %v639 = vadd.f32 %v625, %v638
    %v640 = vpop.f32.mrf.mxu0
    %v641 = vadd.f32 %v627, %v640
    %642 = vdwg.mxu0
    %643 = vmatpush.bf16.msra.mxu0 %v491
    %644 = vmatpush.bf16.msra.mxu0 %v486
    %645 = vmatpush.bf16.msra.mxu0 %v481
    %646 = vmatpush.bf16.msra.mxu0 %v476
    %647 = vmatpush.bf16.msra.mxu0 %v471
    %648 = vmatpush.bf16.msra.mxu0 %v466
    %649 = vmatpush.bf16.msra.mxu0 %v461
    %650 = vmatpush.bf16.msra.mxu0 %v456
    %651 = vmatmul.bf16.gmra.mxu0 %v101
    %v652 = vpop.f32.mrf.mxu0
    %v653 = vadd.f32 0.0, %v652
    %v654 = vpop.f32.mrf.mxu0
    %v655 = vadd.f32 0.0, %v654
    %656 = vdwg.mxu0
    %657 = vmatpush.bf16.msra.mxu0 %v531
    %658 = vmatpush.bf16.msra.mxu0 %v526
    %659 = vmatpush.bf16.msra.mxu0 %v521
    %660 = vmatpush.bf16.msra.mxu0 %v516
    %661 = vmatpush.bf16.msra.mxu0 %v511
    %662 = vmatpush.bf16.msra.mxu0 %v506
    %663 = vmatpush.bf16.msra.mxu0 %v501
    %664 = vmatpush.bf16.msra.mxu0 %v496
    %665 = vmatmul.bf16.gmra.mxu0 %v102
    %v666 = vpop.f32.mrf.mxu0
    %v667 = vadd.f32 %v653, %v666
    %v668 = vpop.f32.mrf.mxu0
    %v669 = vadd.f32 %v655, %v668
    %670 = vdwg.mxu0
    %671 = vmatpush.bf16.msra.mxu0 %v492
    %672 = vmatpush.bf16.msra.mxu0 %v487
    %673 = vmatpush.bf16.msra.mxu0 %v482
    %674 = vmatpush.bf16.msra.mxu0 %v477
    %675 = vmatpush.bf16.msra.mxu0 %v472
    %676 = vmatpush.bf16.msra.mxu0 %v467
    %677 = vmatpush.bf16.msra.mxu0 %v462
    %678 = vmatpush.bf16.msra.mxu0 %v457
    %679 = vmatmul.bf16.gmra.mxu0 %v101
    %v680 = vpop.f32.mrf.mxu0
    %v681 = vadd.f32 0.0, %v680
    %v682 = vpop.f32.mrf.mxu0
    %v683 = vadd.f32 0.0, %v682
    %684 = vdwg.mxu0
    %685 = vmatpush.bf16.msra.mxu0 %v532
    %686 = vmatpush.bf16.msra.mxu0 %v527
    %687 = vmatpush.bf16.msra.mxu0 %v522
    %688 = vmatpush.bf16.msra.mxu0 %v517
    %689 = vmatpush.bf16.msra.mxu0 %v512
    %690 = vmatpush.bf16.msra.mxu0 %v507
    %691 = vmatpush.bf16.msra.mxu0 %v502
    %692 = vmatpush.bf16.msra.mxu0 %v497
    %693 = vmatmul.bf16.gmra.mxu0 %v102
    %v694 = vpop.f32.mrf.mxu0
    %v695 = vadd.f32 %v681, %v694
    %v696 = vpop.f32.mrf.mxu0
    %v697 = vadd.f32 %v683, %v696
    %698 = vdwg.mxu0
    %699 = vmatpush.bf16.msra.mxu0 %v493
    %700 = vmatpush.bf16.msra.mxu0 %v488
    %701 = vmatpush.bf16.msra.mxu0 %v483
    %702 = vmatpush.bf16.msra.mxu0 %v478
    %703 = vmatpush.bf16.msra.mxu0 %v473
    %704 = vmatpush.bf16.msra.mxu0 %v468
    %705 = vmatpush.bf16.msra.mxu0 %v463
    %706 = vmatpush.bf16.msra.mxu0 %v458
    %707 = vmatmul.bf16.gmra.mxu0 %v101
    %v708 = vpop.f32.mrf.mxu0
    %v709 = vadd.f32 0.0, %v708
    %v710 = vpop.f32.mrf.mxu0
    %v711 = vadd.f32 0.0, %v710
    %712 = vdwg.mxu0
    %713 = vmatpush.bf16.msra.mxu0 %v533
    %714 = vmatpush.bf16.msra.mxu0 %v528
    %715 = vmatpush.bf16.msra.mxu0 %v523
    %716 = vmatpush.bf16.msra.mxu0 %v518
    %717 = vmatpush.bf16.msra.mxu0 %v513
    %718 = vmatpush.bf16.msra.mxu0 %v508
    %719 = vmatpush.bf16.msra.mxu0 %v503
    %720 = vmatpush.bf16.msra.mxu0 %v498
    %721 = vmatmul.bf16.gmra.mxu0 %v102
    %v722 = vpop.f32.mrf.mxu0
    %v723 = vadd.f32 %v709, %v722
    %v724 = vpop.f32.mrf.mxu0
    %v725 = vadd.f32 %v711, %v724
    %726 = vdwg.mxu0
    %727 = vmatpush.bf16.msra.mxu0 %v494
    %728 = vmatpush.bf16.msra.mxu0 %v489
    %729 = vmatpush.bf16.msra.mxu0 %v484
    %730 = vmatpush.bf16.msra.mxu0 %v479
    %731 = vmatpush.bf16.msra.mxu0 %v474
    %732 = vmatpush.bf16.msra.mxu0 %v469
    %733 = vmatpush.bf16.msra.mxu0 %v464
    %734 = vmatpush.bf16.msra.mxu0 %v459
    %735 = vmatmul.bf16.gmra.mxu0 %v101
    %v736 = vpop.f32.mrf.mxu0
    %v737 = vadd.f32 0.0, %v736
    %v738 = vpop.f32.mrf.mxu0
    %v739 = vadd.f32 0.0, %v738
    %740 = vdwg.mxu0
    %741 = vmatpush.bf16.msra.mxu0 %v534
    %742 = vmatpush.bf16.msra.mxu0 %v529
    %743 = vmatpush.bf16.msra.mxu0 %v524
    %744 = vmatpush.bf16.msra.mxu0 %v519
    %745 = vmatpush.bf16.msra.mxu0 %v514
    %746 = vmatpush.bf16.msra.mxu0 %v509
    %747 = vmatpush.bf16.msra.mxu0 %v504
    %748 = vmatpush.bf16.msra.mxu0 %v499
    %749 = vmatmul.bf16.gmra.mxu0 %v102
    %v750 = vpop.f32.mrf.mxu0
    %v751 = vadd.f32 %v737, %v750
    %v752 = vpop.f32.mrf.mxu0
    %v753 = vadd.f32 %v739, %v752
    %754 = vdwg.mxu0
    %v755 = vadd.f32 %v87, %v639
    %v756 = vadd.f32 %v88, %v667
    %v757 = vadd.f32 %v89, %v695
    %v758 = vadd.f32 %v90, %v723
    %v759 = vadd.f32 %v91, %v751
    %v760 = vadd.f32 %v92, %v641
    %v761 = vadd.f32 %v93, %v669
    %v762 = vadd.f32 %v94, %v697
    %v763 = vadd.f32 %v95, %v725
    %v764 = vadd.f32 %v96, %v753
    %765 = vst [vmem:[#allocation2] sm:$0xff] %v755
    %766 = vst [vmem:[#allocation2 + $0x8] sm:$0xff] %v756
    %767 = vst [vmem:[#allocation2 + $0x10] sm:$0xff] %v757
    %768 = vst [vmem:[#allocation2 + $0x18] sm:$0xff] %v758
    %769 = vst [vmem:[#allocation2 + $0x20] sm:$0xff] %v759
    %770 = vst [vmem:[#allocation2 + $0x28] sm:$0xff] %v760
    %771 = vst [vmem:[#allocation2 + $0x30] sm:$0xff] %v761
    %772 = vst [vmem:[#allocation2 + $0x38] sm:$0xff] %v762
    %773 = vst [vmem:[#allocation2 + $0x40] sm:$0xff] %v763
    %774 = vst [vmem:[#allocation2 + $0x48] sm:$0xff] %v764
    // Predicated region
    $region46: #{cnn_word_to_image_projector.1} parent=1 // pred_check
      %p775 = pneg %p73
    $region47: #{cnn_word_to_image_projector.1} parent=1 // pred_check_branch
      %777 = sbr.rel (%p775) target = $region49
    $region48: #{cnn_word_to_image_projector.1} parent=1 // pred_region
      %v778 = vld [vmem:[#allocation2] sm:$0xff]
      %v779 = vld [vmem:[#allocation2 + $0x8] sm:$0xff]
      %v780 = vld [vmem:[#allocation2 + $0x10] sm:$0xff]
      %v781 = vld [vmem:[#allocation2 + $0x18] sm:$0xff]
      %v782 = vld [vmem:[#allocation2 + $0x20] sm:$0xff]
      %v783 = vld [vmem:[#allocation2 + $0x28] sm:$0xff]
      %v784 = vld [vmem:[#allocation2 + $0x30] sm:$0xff]
      %v785 = vld [vmem:[#allocation2 + $0x38] sm:$0xff]
      %v786 = vld [vmem:[#allocation2 + $0x40] sm:$0xff]
      %v787 = vld [vmem:[#allocation2 + $0x48] sm:$0xff]
      %v788 = vld [vmem:[%s2] sm:$0x1f]
      %v790 = vperm.slane %v788, 0
      %v791 = vperm.slane %v788, 1
      %v792 = vperm.slane %v788, 2
      %v793 = vperm.slane %v788, 3
      %v794 = vperm.slane %v788, 4
      %v800 = vadd.f32 %v778, %v790
      %v801 = vadd.f32 %v779, %v791
      %v802 = vadd.f32 %v780, %v792
      %v803 = vadd.f32 %v781, %v793
      %v804 = vadd.f32 %v782, %v794
      %v805 = vadd.f32 %v783, %v790
      %v806 = vadd.f32 %v784, %v791
      %v807 = vadd.f32 %v785, %v792
      %v808 = vadd.f32 %v786, %v793
      %v809 = vadd.f32 %v787, %v794
      %v810 = vmax.f32 %v800, 0.0
      %v811 = vmax.f32 %v801, 0.0
      %v812 = vmax.f32 %v802, 0.0
      %v813 = vmax.f32 %v803, 0.0
      %v814 = vmax.f32 %v804, 0.0
      %v815 = vmax.f32 %v805, 0.0
      %v816 = vmax.f32 %v806, 0.0
      %v817 = vmax.f32 %v807, 0.0
      %v818 = vmax.f32 %v808, 0.0
      %v819 = vmax.f32 %v809, 0.0
      %v820 = vpack.c.bf16 %v815, %v810
      %v821 = vpack.c.bf16 %v816, %v811
      %v822 = vpack.c.bf16 %v817, %v812
      %v823 = vpack.c.bf16 %v818, %v813
      %v824 = vpack.c.bf16 %v819, %v814
      %v825 = vld [vmem:[#allocation5] sm:$0xff]
      %v826 = vld [vmem:[#allocation5 + $0x8] sm:$0xff]
      %v827 = vld [vmem:[#allocation5 + $0x10] sm:$0xff]
      %v828 = vld [vmem:[#allocation5 + $0x18] sm:$0xff]
      %v829 = vld [vmem:[#allocation5 + $0x20] sm:$0xff]
      %v830 = vld [vmem:[#allocation5 + $0x28] sm:$0xff]
      %v831 = vld [vmem:[#allocation5 + $0x30] sm:$0xff]
      %v832 = vld [vmem:[#allocation5 + $0x38] sm:$0xff]
      %v833 = vld [vmem:[#allocation5 + $0x40] sm:$0xff]
      %v834 = vld [vmem:[#allocation5 + $0x48] sm:$0xff]
      %v835 = vld [vmem:[#allocation5 + $0x50] sm:$0xff]
      %v836 = vld [vmem:[#allocation5 + $0x58] sm:$0xff]
      %v837 = vld [vmem:[#allocation5 + $0x60] sm:$0xff]
      %v838 = vld [vmem:[#allocation5 + $0x68] sm:$0xff]
      %v839 = vld [vmem:[#allocation5 + $0x70] sm:$0xff]
      %v840 = vld [vmem:[#allocation5 + $0x78] sm:$0xff]
      %v841 = vld [vmem:[#allocation5 + $0x80] sm:$0xff]
      %v842 = vld [vmem:[#allocation5 + $0x88] sm:$0xff]
      %v843 = vld [vmem:[#allocation5 + $0x90] sm:$0xff]
      %v844 = vld [vmem:[#allocation5 + $0x98] sm:$0xff]
      %v845 = vld [vmem:[#allocation5 + $0xa0] sm:$0xff]
      %v846 = vld [vmem:[#allocation5 + $0xa8] sm:$0xff]
      %v847 = vld [vmem:[#allocation5 + $0xb0] sm:$0xff]
      %v848 = vld [vmem:[#allocation5 + $0xb8] sm:$0xff]
      %v849 = vld [vmem:[#allocation5 + $0xc0] sm:$0xff]
      %v850 = vld [vmem:[#allocation5 + $0xc8] sm:$0xff]
      %v851 = vld [vmem:[#allocation5 + $0xd0] sm:$0xff]
      %v852 = vld [vmem:[#allocation5 + $0xd8] sm:$0xff]
      %v853 = vld [vmem:[#allocation5 + $0xe0] sm:$0xff]
      %v854 = vld [vmem:[#allocation5 + $0xe8] sm:$0xff]
      %v855 = vld [vmem:[#allocation5 + $0xf0] sm:$0xff]
      %v856 = vld [vmem:[#allocation5 + $0xf8] sm:$0xff]
      %v857 = vld [vmem:[#allocation5 + $0x100] sm:$0xff]
      %v858 = vld [vmem:[#allocation5 + $0x108] sm:$0xff]
      %v859 = vld [vmem:[#allocation5 + $0x110] sm:$0xff]
      %v860 = vld [vmem:[#allocation5 + $0x118] sm:$0xff]
      %v861 = vld [vmem:[#allocation5 + $0x120] sm:$0xff]
      %v862 = vld [vmem:[#allocation5 + $0x128] sm:$0xff]
      %v863 = vld [vmem:[#allocation5 + $0x130] sm:$0xff]
      %v864 = vld [vmem:[#allocation5 + $0x138] sm:$0xff]
      %v865 = vld [vmem:[#allocation5 + $0x140] sm:$0xff]
      %v866 = vld [vmem:[#allocation5 + $0x148] sm:$0xff]
      %v867 = vld [vmem:[#allocation5 + $0x150] sm:$0xff]
      %v868 = vld [vmem:[#allocation5 + $0x158] sm:$0xff]
      %v869 = vld [vmem:[#allocation5 + $0x160] sm:$0xff]
      %v870 = vld [vmem:[#allocation5 + $0x168] sm:$0xff]
      %v871 = vld [vmem:[#allocation5 + $0x170] sm:$0xff]
      %v872 = vld [vmem:[#allocation5 + $0x178] sm:$0xff]
      %v873 = vld [vmem:[#allocation5 + $0x180] sm:$0xff]
      %v874 = vld [vmem:[#allocation5 + $0x188] sm:$0xff]
      %v875 = vld [vmem:[#allocation5 + $0x190] sm:$0xff]
      %v876 = vld [vmem:[#allocation5 + $0x198] sm:$0xff]
      %v877 = vld [vmem:[#allocation5 + $0x1a0] sm:$0xff]
      %v878 = vld [vmem:[#allocation5 + $0x1a8] sm:$0xff]
      %v879 = vld [vmem:[#allocation5 + $0x1b0] sm:$0xff]
      %v880 = vld [vmem:[#allocation5 + $0x1b8] sm:$0xff]
      %v881 = vld [vmem:[#allocation5 + $0x1c0] sm:$0xff]
      %v882 = vld [vmem:[#allocation5 + $0x1c8] sm:$0xff]
      %v883 = vld [vmem:[#allocation5 + $0x1d0] sm:$0xff]
      %v884 = vld [vmem:[#allocation5 + $0x1d8] sm:$0xff]
      %v885 = vld [vmem:[#allocation5 + $0x1e0] sm:$0xff]
      %v886 = vld [vmem:[#allocation5 + $0x1e8] sm:$0xff]
      %v887 = vld [vmem:[#allocation5 + $0x1f0] sm:$0xff]
      %v888 = vld [vmem:[#allocation5 + $0x1f8] sm:$0xff]
      %v889 = vld [vmem:[#allocation5 + $0x200] sm:$0xff]
      %v890 = vld [vmem:[#allocation5 + $0x208] sm:$0xff]
      %v891 = vld [vmem:[#allocation5 + $0x210] sm:$0xff]
      %v892 = vld [vmem:[#allocation5 + $0x218] sm:$0xff]
      %v893 = vld [vmem:[#allocation5 + $0x220] sm:$0xff]
      %v894 = vld [vmem:[#allocation5 + $0x228] sm:$0xff]
      %v895 = vld [vmem:[#allocation5 + $0x230] sm:$0xff]
      %v896 = vld [vmem:[#allocation5 + $0x238] sm:$0xff]
      %v897 = vld [vmem:[#allocation5 + $0x240] sm:$0xff]
      %v898 = vld [vmem:[#allocation5 + $0x248] sm:$0xff]
      %v899 = vld [vmem:[#allocation5 + $0x250] sm:$0xff]
      %v900 = vld [vmem:[#allocation5 + $0x258] sm:$0xff]
      %v901 = vld [vmem:[#allocation5 + $0x260] sm:$0xff]
      %v902 = vld [vmem:[#allocation5 + $0x268] sm:$0xff]
      %v903 = vld [vmem:[#allocation5 + $0x270] sm:$0xff]
      %v904 = vld [vmem:[#allocation5 + $0x278] sm:$0xff]
      %v905 = vld [vmem:[%s4] sm:$0x3]
      %v907 = vperm.slane %v905, 0
      %v908 = vperm.slane %v905, 1
      %v991 = vunpack.c.l.b16 %v825
      %v992 = vunpack.c.h.b16 %v825
      %v993 = vunpack.c.l.b16 %v826
      %v994 = vunpack.c.h.b16 %v826
      %v995 = vunpack.c.l.b16 %v827
      %v996 = vunpack.c.h.b16 %v827
      %v997 = vunpack.c.l.b16 %v828
      %v998 = vunpack.c.h.b16 %v828
      %v999 = vunpack.c.l.b16 %v829
      %v1000 = vunpack.c.h.b16 %v829
      %v1001 = vunpack.c.l.b16 %v830
      %v1002 = vunpack.c.h.b16 %v830
      %v1003 = vunpack.c.l.b16 %v831
      %v1004 = vunpack.c.h.b16 %v831
      %v1005 = vunpack.c.l.b16 %v832
      %v1006 = vunpack.c.h.b16 %v832
      %v1007 = vunpack.c.l.b16 %v833
      %v1008 = vunpack.c.h.b16 %v833
      %v1009 = vunpack.c.l.b16 %v834
      %v1010 = vunpack.c.h.b16 %v834
      %v1011 = vunpack.c.l.b16 %v835
      %v1012 = vunpack.c.h.b16 %v835
      %v1013 = vunpack.c.l.b16 %v836
      %v1014 = vunpack.c.h.b16 %v836
      %v1015 = vunpack.c.l.b16 %v837
      %v1016 = vunpack.c.h.b16 %v837
      %v1017 = vunpack.c.l.b16 %v838
      %v1018 = vunpack.c.h.b16 %v838
      %v1019 = vunpack.c.l.b16 %v839
      %v1020 = vunpack.c.h.b16 %v839
      %v1021 = vunpack.c.l.b16 %v840
      %v1022 = vunpack.c.h.b16 %v840
      %v1023 = vunpack.c.l.b16 %v841
      %v1024 = vunpack.c.h.b16 %v841
      %v1025 = vunpack.c.l.b16 %v842
      %v1026 = vunpack.c.h.b16 %v842
      %v1027 = vunpack.c.l.b16 %v843
      %v1028 = vunpack.c.h.b16 %v843
      %v1029 = vunpack.c.l.b16 %v844
      %v1030 = vunpack.c.h.b16 %v844
      %v1031 = vunpack.c.l.b16 %v845
      %v1032 = vunpack.c.h.b16 %v845
      %v1033 = vunpack.c.l.b16 %v846
      %v1034 = vunpack.c.h.b16 %v846
      %v1035 = vunpack.c.l.b16 %v847
      %v1036 = vunpack.c.h.b16 %v847
      %v1037 = vunpack.c.l.b16 %v848
      %v1038 = vunpack.c.h.b16 %v848
      %v1039 = vunpack.c.l.b16 %v849
      %v1040 = vunpack.c.h.b16 %v849
      %v1041 = vunpack.c.l.b16 %v850
      %v1042 = vunpack.c.h.b16 %v850
      %v1043 = vunpack.c.l.b16 %v851
      %v1044 = vunpack.c.h.b16 %v851
      %v1045 = vunpack.c.l.b16 %v852
      %v1046 = vunpack.c.h.b16 %v852
      %v1047 = vunpack.c.l.b16 %v853
      %v1048 = vunpack.c.h.b16 %v853
      %v1049 = vunpack.c.l.b16 %v854
      %v1050 = vunpack.c.h.b16 %v854
      %v1051 = vunpack.c.l.b16 %v855
      %v1052 = vunpack.c.h.b16 %v855
      %v1053 = vunpack.c.l.b16 %v856
      %v1054 = vunpack.c.h.b16 %v856
      %v1055 = vunpack.c.l.b16 %v857
      %v1056 = vunpack.c.h.b16 %v857
      %v1057 = vunpack.c.l.b16 %v858
      %v1058 = vunpack.c.h.b16 %v858
      %v1059 = vunpack.c.l.b16 %v859
      %v1060 = vunpack.c.h.b16 %v859
      %v1061 = vunpack.c.l.b16 %v860
      %v1062 = vunpack.c.h.b16 %v860
      %v1063 = vunpack.c.l.b16 %v861
      %v1064 = vunpack.c.h.b16 %v861
      %v1065 = vunpack.c.l.b16 %v862
      %v1066 = vunpack.c.h.b16 %v862
      %v1067 = vunpack.c.l.b16 %v863
      %v1068 = vunpack.c.h.b16 %v863
      %v1069 = vunpack.c.l.b16 %v864
      %v1070 = vunpack.c.h.b16 %v864
      %v1071 = vunpack.c.l.b16 %v865
      %v1072 = vunpack.c.h.b16 %v865
      %v1073 = vunpack.c.l.b16 %v866
      %v1074 = vunpack.c.h.b16 %v866
      %v1075 = vunpack.c.l.b16 %v867
      %v1076 = vunpack.c.h.b16 %v867
      %v1077 = vunpack.c.l.b16 %v868
      %v1078 = vunpack.c.h.b16 %v868
      %v1079 = vunpack.c.l.b16 %v869
      %v1080 = vunpack.c.h.b16 %v869
      %v1081 = vunpack.c.l.b16 %v870
      %v1082 = vunpack.c.h.b16 %v870
      %v1083 = vunpack.c.l.b16 %v871
      %v1084 = vunpack.c.h.b16 %v871
      %v1085 = vunpack.c.l.b16 %v872
      %v1086 = vunpack.c.h.b16 %v872
      %v1087 = vunpack.c.l.b16 %v873
      %v1088 = vunpack.c.h.b16 %v873
      %v1089 = vunpack.c.l.b16 %v874
      %v1090 = vunpack.c.h.b16 %v874
      %v1091 = vunpack.c.l.b16 %v875
      %v1092 = vunpack.c.h.b16 %v875
      %v1093 = vunpack.c.l.b16 %v876
      %v1094 = vunpack.c.h.b16 %v876
      %v1095 = vunpack.c.l.b16 %v877
      %v1096 = vunpack.c.h.b16 %v877
      %v1097 = vunpack.c.l.b16 %v878
      %v1098 = vunpack.c.h.b16 %v878
      %v1099 = vunpack.c.l.b16 %v879
      %v1100 = vunpack.c.h.b16 %v879
      %v1101 = vunpack.c.l.b16 %v880
      %v1102 = vunpack.c.h.b16 %v880
      %v1103 = vunpack.c.l.b16 %v881
      %v1104 = vunpack.c.h.b16 %v881
      %v1105 = vunpack.c.l.b16 %v882
      %v1106 = vunpack.c.h.b16 %v882
      %v1107 = vunpack.c.l.b16 %v883
      %v1108 = vunpack.c.h.b16 %v883
      %v1109 = vunpack.c.l.b16 %v884
      %v1110 = vunpack.c.h.b16 %v884
      %v1111 = vunpack.c.l.b16 %v885
      %v1112 = vunpack.c.h.b16 %v885
      %v1113 = vunpack.c.l.b16 %v886
      %v1114 = vunpack.c.h.b16 %v886
      %v1115 = vunpack.c.l.b16 %v887
      %v1116 = vunpack.c.h.b16 %v887
      %v1117 = vunpack.c.l.b16 %v888
      %v1118 = vunpack.c.h.b16 %v888
      %v1119 = vunpack.c.l.b16 %v889
      %v1120 = vunpack.c.h.b16 %v889
      %v1121 = vunpack.c.l.b16 %v890
      %v1122 = vunpack.c.h.b16 %v890
      %v1123 = vunpack.c.l.b16 %v891
      %v1124 = vunpack.c.h.b16 %v891
      %v1125 = vunpack.c.l.b16 %v892
      %v1126 = vunpack.c.h.b16 %v892
      %v1127 = vunpack.c.l.b16 %v893
      %v1128 = vunpack.c.h.b16 %v893
      %v1129 = vunpack.c.l.b16 %v894
      %v1130 = vunpack.c.h.b16 %v894
      %v1131 = vunpack.c.l.b16 %v895
      %v1132 = vunpack.c.h.b16 %v895
      %v1133 = vunpack.c.l.b16 %v896
      %v1134 = vunpack.c.h.b16 %v896
      %v1135 = vunpack.c.l.b16 %v897
      %v1136 = vunpack.c.h.b16 %v897
      %v1137 = vunpack.c.l.b16 %v898
      %v1138 = vunpack.c.h.b16 %v898
      %v1139 = vunpack.c.l.b16 %v899
      %v1140 = vunpack.c.h.b16 %v899
      %v1141 = vunpack.c.l.b16 %v900
      %v1142 = vunpack.c.h.b16 %v900
      %v1143 = vunpack.c.l.b16 %v901
      %v1144 = vunpack.c.h.b16 %v901
      %v1145 = vunpack.c.l.b16 %v902
      %v1146 = vunpack.c.h.b16 %v902
      %v1147 = vunpack.c.l.b16 %v903
      %v1148 = vunpack.c.h.b16 %v903
      %v1149 = vunpack.c.l.b16 %v904
      %v1150 = vunpack.c.h.b16 %v904
      %v1151 = vpack.c.b16 %v993, %v991
      %v1152 = vpack.c.b16 %v994, %v992
      %v1153 = vpack.c.b16 %v997, %v995
      %v1154 = vpack.c.b16 %v998, %v996
      %v1155 = vpack.c.b16 %v1001, %v999
      %v1156 = vpack.c.b16 %v1002, %v1000
      %v1157 = vpack.c.b16 %v1005, %v1003
      %v1158 = vpack.c.b16 %v1006, %v1004
      %v1159 = vpack.c.b16 %v1009, %v1007
      %v1160 = vpack.c.b16 %v1010, %v1008
      %v1161 = vpack.c.b16 %v1013, %v1011
      %v1162 = vpack.c.b16 %v1014, %v1012
      %v1163 = vpack.c.b16 %v1017, %v1015
      %v1164 = vpack.c.b16 %v1018, %v1016
      %v1165 = vpack.c.b16 %v1021, %v1019
      %v1166 = vpack.c.b16 %v1022, %v1020
      %v1167 = vpack.c.b16 %v1025, %v1023
      %v1168 = vpack.c.b16 %v1026, %v1024
      %v1169 = vpack.c.b16 %v1029, %v1027
      %v1170 = vpack.c.b16 %v1030, %v1028
      %v1171 = vpack.c.b16 %v1033, %v1031
      %v1172 = vpack.c.b16 %v1034, %v1032
      %v1173 = vpack.c.b16 %v1037, %v1035
      %v1174 = vpack.c.b16 %v1038, %v1036
      %v1175 = vpack.c.b16 %v1041, %v1039
      %v1176 = vpack.c.b16 %v1042, %v1040
      %v1177 = vpack.c.b16 %v1045, %v1043
      %v1178 = vpack.c.b16 %v1046, %v1044
      %v1179 = vpack.c.b16 %v1049, %v1047
      %v1180 = vpack.c.b16 %v1050, %v1048
      %v1181 = vpack.c.b16 %v1053, %v1051
      %v1182 = vpack.c.b16 %v1054, %v1052
      %v1183 = vpack.c.b16 %v1057, %v1055
      %v1184 = vpack.c.b16 %v1058, %v1056
      %v1185 = vpack.c.b16 %v1061, %v1059
      %v1186 = vpack.c.b16 %v1062, %v1060
      %v1187 = vpack.c.b16 %v1065, %v1063
      %v1188 = vpack.c.b16 %v1066, %v1064
      %v1189 = vpack.c.b16 %v1069, %v1067
      %v1190 = vpack.c.b16 %v1070, %v1068
      %v1191 = vpack.c.b16 %v1073, %v1071
      %v1192 = vpack.c.b16 %v1074, %v1072
      %v1193 = vpack.c.b16 %v1077, %v1075
      %v1194 = vpack.c.b16 %v1078, %v1076
      %v1195 = vpack.c.b16 %v1081, %v1079
      %v1196 = vpack.c.b16 %v1082, %v1080
      %v1197 = vpack.c.b16 %v1085, %v1083
      %v1198 = vpack.c.b16 %v1086, %v1084
      %v1199 = vpack.c.b16 %v1089, %v1087
      %v1200 = vpack.c.b16 %v1090, %v1088
      %v1201 = vpack.c.b16 %v1093, %v1091
      %v1202 = vpack.c.b16 %v1094, %v1092
      %v1203 = vpack.c.b16 %v1097, %v1095
      %v1204 = vpack.c.b16 %v1098, %v1096
      %v1205 = vpack.c.b16 %v1101, %v1099
      %v1206 = vpack.c.b16 %v1102, %v1100
      %v1207 = vpack.c.b16 %v1105, %v1103
      %v1208 = vpack.c.b16 %v1106, %v1104
      %v1209 = vpack.c.b16 %v1109, %v1107
      %v1210 = vpack.c.b16 %v1110, %v1108
      %v1211 = vpack.c.b16 %v1113, %v1111
      %v1212 = vpack.c.b16 %v1114, %v1112
      %v1213 = vpack.c.b16 %v1117, %v1115
      %v1214 = vpack.c.b16 %v1118, %v1116
      %v1215 = vpack.c.b16 %v1121, %v1119
      %v1216 = vpack.c.b16 %v1122, %v1120
      %v1217 = vpack.c.b16 %v1125, %v1123
      %v1218 = vpack.c.b16 %v1126, %v1124
      %v1219 = vpack.c.b16 %v1129, %v1127
      %v1220 = vpack.c.b16 %v1130, %v1128
      %v1221 = vpack.c.b16 %v1133, %v1131
      %v1222 = vpack.c.b16 %v1134, %v1132
      %v1223 = vpack.c.b16 %v1137, %v1135
      %v1224 = vpack.c.b16 %v1138, %v1136
      %v1225 = vpack.c.b16 %v1141, %v1139
      %v1226 = vpack.c.b16 %v1142, %v1140
      %v1227 = vpack.c.b16 %v1145, %v1143
      %v1228 = vpack.c.b16 %v1146, %v1144
      %v1229 = vpack.c.b16 %v1149, %v1147
      %v1230 = vpack.c.b16 %v1150, %v1148
      %1311 = vmatpush.bf16.msra.mxu0 %v1165
      %1312 = vmatpush.bf16.msra.mxu0 %v1163
      %1313 = vmatpush.bf16.msra.mxu0 %v1161
      %1314 = vmatpush.bf16.msra.mxu0 %v1159
      %1315 = vmatpush.bf16.msra.mxu0 %v1157
      %1316 = vmatpush.bf16.msra.mxu0 %v1155
      %1317 = vmatpush.bf16.msra.mxu0 %v1153
      %1318 = vmatpush.bf16.msra.mxu0 %v1151
      %1319 = vmatmul.bf16.gmra.mxu0 %v820
      %v1320 = vpop.f32.mrf.mxu0
      %v1321 = vadd.f32 %v907, %v1320
      %v1322 = vpop.f32.mrf.mxu0
      %v1323 = vadd.f32 %v907, %v1322
      %1324 = vdwg.mxu0
      %1325 = vmatpush.bf16.msra.mxu0 %v1181
      %1326 = vmatpush.bf16.msra.mxu0 %v1179
      %1327 = vmatpush.bf16.msra.mxu0 %v1177
      %1328 = vmatpush.bf16.msra.mxu0 %v1175
      %1329 = vmatpush.bf16.msra.mxu0 %v1173
      %1330 = vmatpush.bf16.msra.mxu0 %v1171
      %1331 = vmatpush.bf16.msra.mxu0 %v1169
      %1332 = vmatpush.bf16.msra.mxu0 %v1167
      %1333 = vmatmul.bf16.gmra.mxu0 %v821
      %v1334 = vpop.f32.mrf.mxu0
      %v1335 = vadd.f32 %v1321, %v1334
      %v1336 = vpop.f32.mrf.mxu0
      %v1337 = vadd.f32 %v1323, %v1336
      %1338 = vdwg.mxu0
      %1339 = vmatpush.bf16.msra.mxu0 %v1197
      %1340 = vmatpush.bf16.msra.mxu0 %v1195
      %1341 = vmatpush.bf16.msra.mxu0 %v1193
      %1342 = vmatpush.bf16.msra.mxu0 %v1191
      %1343 = vmatpush.bf16.msra.mxu0 %v1189
      %1344 = vmatpush.bf16.msra.mxu0 %v1187
      %1345 = vmatpush.bf16.msra.mxu0 %v1185
      %1346 = vmatpush.bf16.msra.mxu0 %v1183
      %1347 = vmatmul.bf16.gmra.mxu0 %v822
      %v1348 = vpop.f32.mrf.mxu0
      %v1349 = vadd.f32 %v1335, %v1348
      %v1350 = vpop.f32.mrf.mxu0
      %v1351 = vadd.f32 %v1337, %v1350
      %1352 = vdwg.mxu0
      %1353 = vmatpush.bf16.msra.mxu0 %v1213
      %1354 = vmatpush.bf16.msra.mxu0 %v1211
      %1355 = vmatpush.bf16.msra.mxu0 %v1209
      %1356 = vmatpush.bf16.msra.mxu0 %v1207
      %1357 = vmatpush.bf16.msra.mxu0 %v1205
      %1358 = vmatpush.bf16.msra.mxu0 %v1203
      %1359 = vmatpush.bf16.msra.mxu0 %v1201
      %1360 = vmatpush.bf16.msra.mxu0 %v1199
      %1361 = vmatmul.bf16.gmra.mxu0 %v823
      %v1362 = vpop.f32.mrf.mxu0
      %v1363 = vadd.f32 %v1349, %v1362
      %v1364 = vpop.f32.mrf.mxu0
      %v1365 = vadd.f32 %v1351, %v1364
      %1366 = vdwg.mxu0
      %1367 = vmatpush.bf16.msra.mxu0 %v1229
      %1368 = vmatpush.bf16.msra.mxu0 %v1227
      %1369 = vmatpush.bf16.msra.mxu0 %v1225
      %1370 = vmatpush.bf16.msra.mxu0 %v1223
      %1371 = vmatpush.bf16.msra.mxu0 %v1221
      %1372 = vmatpush.bf16.msra.mxu0 %v1219
      %1373 = vmatpush.bf16.msra.mxu0 %v1217
      %1374 = vmatpush.bf16.msra.mxu0 %v1215
      %1375 = vmatmul.bf16.gmra.mxu0 %v824
      %v1376 = vpop.f32.mrf.mxu0
      %v1377 = vadd.f32 %v1363, %v1376
      %v1378 = vpop.f32.mrf.mxu0
      %v1379 = vadd.f32 %v1365, %v1378
      %1380 = vdwg.mxu0
      %1381 = vmatpush.bf16.msra.mxu0 %v1166
      %1382 = vmatpush.bf16.msra.mxu0 %v1164
      %1383 = vmatpush.bf16.msra.mxu0 %v1162
      %1384 = vmatpush.bf16.msra.mxu0 %v1160
      %1385 = vmatpush.bf16.msra.mxu0 %v1158
      %1386 = vmatpush.bf16.msra.mxu0 %v1156
      %1387 = vmatpush.bf16.msra.mxu0 %v1154
      %1388 = vmatpush.bf16.msra.mxu0 %v1152
      %1389 = vmatmul.bf16.gmra.mxu0 %v820
      %v1390 = vpop.f32.mrf.mxu0
      %v1391 = vadd.f32 %v908, %v1390
      %v1392 = vpop.f32.mrf.mxu0
      %v1393 = vadd.f32 %v908, %v1392
      %1394 = vdwg.mxu0
      %1395 = vmatpush.bf16.msra.mxu0 %v1182
      %1396 = vmatpush.bf16.msra.mxu0 %v1180
      %1397 = vmatpush.bf16.msra.mxu0 %v1178
      %1398 = vmatpush.bf16.msra.mxu0 %v1176
      %1399 = vmatpush.bf16.msra.mxu0 %v1174
      %1400 = vmatpush.bf16.msra.mxu0 %v1172
      %1401 = vmatpush.bf16.msra.mxu0 %v1170
      %1402 = vmatpush.bf16.msra.mxu0 %v1168
      %1403 = vmatmul.bf16.gmra.mxu0 %v821
      %v1404 = vpop.f32.mrf.mxu0
      %v1405 = vadd.f32 %v1391, %v1404
      %v1406 = vpop.f32.mrf.mxu0
      %v1407 = vadd.f32 %v1393, %v1406
      %1408 = vdwg.mxu0
      %1409 = vmatpush.bf16.msra.mxu0 %v1198
      %1410 = vmatpush.bf16.msra.mxu0 %v1196
      %1411 = vmatpush.bf16.msra.mxu0 %v1194
      %1412 = vmatpush.bf16.msra.mxu0 %v1192
      %1413 = vmatpush.bf16.msra.mxu0 %v1190
      %1414 = vmatpush.bf16.msra.mxu0 %v1188
      %1415 = vmatpush.bf16.msra.mxu0 %v1186
      %1416 = vmatpush.bf16.msra.mxu0 %v1184
      %1417 = vmatmul.bf16.gmra.mxu0 %v822
      %v1418 = vpop.f32.mrf.mxu0
      %v1419 = vadd.f32 %v1405, %v1418
      %v1420 = vpop.f32.mrf.mxu0
      %v1421 = vadd.f32 %v1407, %v1420
      %1422 = vdwg.mxu0
      %1423 = vmatpush.bf16.msra.mxu0 %v1214
      %1424 = vmatpush.bf16.msra.mxu0 %v1212
      %1425 = vmatpush.bf16.msra.mxu0 %v1210
      %1426 = vmatpush.bf16.msra.mxu0 %v1208
      %1427 = vmatpush.bf16.msra.mxu0 %v1206
      %1428 = vmatpush.bf16.msra.mxu0 %v1204
      %1429 = vmatpush.bf16.msra.mxu0 %v1202
      %1430 = vmatpush.bf16.msra.mxu0 %v1200
      %1431 = vmatmul.bf16.gmra.mxu0 %v823
      %v1432 = vpop.f32.mrf.mxu0
      %v1433 = vadd.f32 %v1419, %v1432
      %v1434 = vpop.f32.mrf.mxu0
      %v1435 = vadd.f32 %v1421, %v1434
      %1436 = vdwg.mxu0
      %1437 = vmatpush.bf16.msra.mxu0 %v1230
      %1438 = vmatpush.bf16.msra.mxu0 %v1228
      %1439 = vmatpush.bf16.msra.mxu0 %v1226
      %1440 = vmatpush.bf16.msra.mxu0 %v1224
      %1441 = vmatpush.bf16.msra.mxu0 %v1222
      %1442 = vmatpush.bf16.msra.mxu0 %v1220
      %1443 = vmatpush.bf16.msra.mxu0 %v1218
      %1444 = vmatpush.bf16.msra.mxu0 %v1216
      %1445 = vmatmul.bf16.gmra.mxu0 %v824
      %v1446 = vpop.f32.mrf.mxu0
      %v1447 = vadd.f32 %v1433, %v1446
      %v1448 = vpop.f32.mrf.mxu0
      %v1449 = vadd.f32 %v1435, %v1448
      %1450 = vdwg.mxu0
      %v1451 = vmax.f32 %v1377, 0.0
      %v1452 = vmax.f32 %v1447, 0.0
      %v1453 = vmax.f32 %v1379, 0.0
      %v1454 = vmax.f32 %v1449, 0.0
      %v1455 = vpack.c.bf16 %v1453, %v1451
      %v1456 = vpack.c.bf16 %v1454, %v1452
      %v1457 = vld [vmem:[#allocation7] sm:$0xf]
      %v1458 = vld [vmem:[#allocation7 + $0x4] sm:$0xf]
      %v1459 = vld [vmem:[#allocation7 + $0x8] sm:$0xf]
      %v1460 = vld [vmem:[#allocation7 + $0xc] sm:$0xf]
      %v1461 = vld [vmem:[#allocation7 + $0x10] sm:$0xf]
      %v1462 = vld [vmem:[#allocation7 + $0x14] sm:$0xf]
      %v1463 = vld [vmem:[#allocation7 + $0x18] sm:$0xf]
      %v1464 = vld [vmem:[#allocation7 + $0x1c] sm:$0xf]
      %v1465 = vld [vmem:[#allocation7 + $0x20] sm:$0xf]
      %v1466 = vld [vmem:[#allocation7 + $0x24] sm:$0xf]
      %v1467 = vld [vmem:[#allocation7 + $0x28] sm:$0xf]
      %v1468 = vld [vmem:[#allocation7 + $0x2c] sm:$0xf]
      %v1469 = vld [vmem:[#allocation7 + $0x30] sm:$0xf]
      %v1470 = vld [vmem:[#allocation7 + $0x34] sm:$0xf]
      %v1471 = vld [vmem:[#allocation7 + $0x38] sm:$0xf]
      %v1472 = vld [vmem:[#allocation7 + $0x3c] sm:$0xf]
      %v1473 = vld [vmem:[#allocation7 + $0x40] sm:$0xf]
      %v1474 = vld [vmem:[#allocation7 + $0x44] sm:$0xf]
      %v1475 = vld [vmem:[#allocation7 + $0x48] sm:$0xf]
      %v1476 = vld [vmem:[#allocation7 + $0x4c] sm:$0xf]
      %v1477 = vld [vmem:[#allocation7 + $0x50] sm:$0xf]
      %v1478 = vld [vmem:[#allocation7 + $0x54] sm:$0xf]
      %v1479 = vld [vmem:[#allocation7 + $0x58] sm:$0xf]
      %v1480 = vld [vmem:[#allocation7 + $0x5c] sm:$0xf]
      %v1481 = vld [vmem:[#allocation7 + $0x60] sm:$0xf]
      %v1482 = vld [vmem:[#allocation7 + $0x64] sm:$0xf]
      %v1483 = vld [vmem:[#allocation7 + $0x68] sm:$0xf]
      %v1484 = vld [vmem:[#allocation7 + $0x6c] sm:$0xf]
      %v1485 = vld [vmem:[#allocation7 + $0x70] sm:$0xf]
      %v1486 = vld [vmem:[#allocation7 + $0x74] sm:$0xf]
      %v1487 = vld [vmem:[#allocation7 + $0x78] sm:$0xf]
      %v1488 = vld [vmem:[#allocation7 + $0x7c] sm:$0xf]
      %v1489 = vld [vmem:[%s6] sm:$0x1]
      %v1491 = vperm.slane %v1489, 0
      %v1525 = vunpack.c.l.b16 %v1457
      %v1526 = vunpack.c.l.b16 %v1458
      %v1527 = vunpack.c.l.b16 %v1459
      %v1528 = vunpack.c.l.b16 %v1460
      %v1529 = vunpack.c.l.b16 %v1461
      %v1530 = vunpack.c.l.b16 %v1462
      %v1531 = vunpack.c.l.b16 %v1463
      %v1532 = vunpack.c.l.b16 %v1464
      %v1533 = vunpack.c.l.b16 %v1465
      %v1534 = vunpack.c.l.b16 %v1466
      %v1535 = vunpack.c.l.b16 %v1467
      %v1536 = vunpack.c.l.b16 %v1468
      %v1537 = vunpack.c.l.b16 %v1469
      %v1538 = vunpack.c.l.b16 %v1470
      %v1539 = vunpack.c.l.b16 %v1471
      %v1540 = vunpack.c.l.b16 %v1472
      %v1541 = vunpack.c.l.b16 %v1473
      %v1542 = vunpack.c.l.b16 %v1474
      %v1543 = vunpack.c.l.b16 %v1475
      %v1544 = vunpack.c.l.b16 %v1476
      %v1545 = vunpack.c.l.b16 %v1477
      %v1546 = vunpack.c.l.b16 %v1478
      %v1547 = vunpack.c.l.b16 %v1479
      %v1548 = vunpack.c.l.b16 %v1480
      %v1549 = vunpack.c.l.b16 %v1481
      %v1550 = vunpack.c.l.b16 %v1482
      %v1551 = vunpack.c.l.b16 %v1483
      %v1552 = vunpack.c.l.b16 %v1484
      %v1553 = vunpack.c.l.b16 %v1485
      %v1554 = vunpack.c.l.b16 %v1486
      %v1555 = vunpack.c.l.b16 %v1487
      %v1556 = vunpack.c.l.b16 %v1488
      %v1557 = vpack.c.b16 %v1526, %v1525
      %v1558 = vpack.c.b16 %v1528, %v1527
      %v1559 = vpack.c.b16 %v1530, %v1529
      %v1560 = vpack.c.b16 %v1532, %v1531
      %v1561 = vpack.c.b16 %v1534, %v1533
      %v1562 = vpack.c.b16 %v1536, %v1535
      %v1563 = vpack.c.b16 %v1538, %v1537
      %v1564 = vpack.c.b16 %v1540, %v1539
      %v1565 = vpack.c.b16 %v1542, %v1541
      %v1566 = vpack.c.b16 %v1544, %v1543
      %v1567 = vpack.c.b16 %v1546, %v1545
      %v1568 = vpack.c.b16 %v1548, %v1547
      %v1569 = vpack.c.b16 %v1550, %v1549
      %v1570 = vpack.c.b16 %v1552, %v1551
      %v1571 = vpack.c.b16 %v1554, %v1553
      %v1572 = vpack.c.b16 %v1556, %v1555
      %1589 = vmatpush.bf16.msra.mxu0 %v1564
      %1590 = vmatpush.bf16.msra.mxu0 %v1563
      %1591 = vmatpush.bf16.msra.mxu0 %v1562
      %1592 = vmatpush.bf16.msra.mxu0 %v1561
      %1593 = vmatpush.bf16.msra.mxu0 %v1560
      %1594 = vmatpush.bf16.msra.mxu0 %v1559
      %1595 = vmatpush.bf16.msra.mxu0 %v1558
      %1596 = vmatpush.bf16.msra.mxu0 %v1557
      %1597 = vmatmul.bf16.gmra.mxu0 %v1455
      %v1598 = vpop.f32.mrf.mxu0
      %v1599 = vadd.f32 %v1491, %v1598
      %v1600 = vpop.f32.mrf.mxu0
      %v1601 = vadd.f32 %v1491, %v1600
      %1602 = vdwg.mxu0
      %1603 = vmatpush.bf16.msra.mxu0 %v1572
      %1604 = vmatpush.bf16.msra.mxu0 %v1571
      %1605 = vmatpush.bf16.msra.mxu0 %v1570
      %1606 = vmatpush.bf16.msra.mxu0 %v1569
      %1607 = vmatpush.bf16.msra.mxu0 %v1568
      %1608 = vmatpush.bf16.msra.mxu0 %v1567
      %1609 = vmatpush.bf16.msra.mxu0 %v1566
      %1610 = vmatpush.bf16.msra.mxu0 %v1565
      %1611 = vmatmul.bf16.gmra.mxu0 %v1456
      %v1612 = vpop.f32.mrf.mxu0
      %v1613 = vadd.f32 %v1599, %v1612
      %v1614 = vpop.f32.mrf.mxu0
      %v1615 = vadd.f32 %v1601, %v1614
      %1616 = vdwg.mxu0
      %v1617 = vtanh.pop %v1613
      %v1618 = vtanh.pop %v1615
      %1619 = vst [vmem:[%s7] sm:$0xff] %v1617
      %1620 = vst [vmem:[%s7 + $0x8] sm:$0xff] %v1618
    $region49: #{cnn_word_to_image_projector.1} parent=1 // pred_fallthru
      _
    // Predicated region
    $region50: #{cnn_word_to_image_projector.1} parent=1 // pred_check
      _
    $region51: #{cnn_word_to_image_projector.1} parent=1 // pred_check_branch
      %1622 = sbr.rel (0) target = $region53
    $region52: #{cnn_word_to_image_projector.1} parent=1 // pred_region
      _
    $region53: #{cnn_word_to_image_projector.1} parent=1 // pred_fallthru
      _
    // Predicated region
    $region54: #{cnn_word_to_image_projector.1} parent=1 // pred_check
      _
    $region55: #{cnn_word_to_image_projector.1} parent=1 // pred_check_branch
      %1624 = sbr.rel (0) target = $region57
    $region56: #{cnn_word_to_image_projector.1} parent=1 // pred_region
      _
    $region57: #{cnn_word_to_image_projector.1} parent=1 // pred_fallthru
      _
    %1625 = vsyncpa [#allocation4], 1
    %1626 = vsyncpa [#allocation6], 1

</llo_original>
